<compile_context>
chip_gen: v5e
topology: v5e:2x2
jax: 0.10.0
libtpu: 0.0.40
codegen_flags: <defaults>
</compile_context>

<pallas_src>
import functools

import numpy as np
import jax
import jax.numpy as jnp
from jax import lax
from jax.experimental import pallas as pl
from jax.experimental.pallas import tpu as pltpu

LANE = 128


def _round_up(x, m):
    return (x + m - 1) // m * m


def dqn_kernel(img_ref, wbig_ref, cb_ref, win_ref, bin_ref,
               w1_ref, b1_ref, w2_ref, b2_ref, wout_ref, bout_ref, out_ref):
    # img_ref:  (bt, LIN)        bf16  flattened zero-padded images (lane-dense)
    # wbig_ref: (LIN, 9*PP)      bf16  conv3x3 folded into a matmul weight
    # cb_ref:   (1, PP)          f32   conv bias in (window, channel) lane order
    # win_ref:  (PP, H0) bf16, bin_ref:(1,H0) f32  fc_in (rows permuted+padded)
    # w1/w2/wout bf16 (in, out), biases f32; wout/bout padded to 128 lanes
    # out_ref:  (bt, 128)        f32
    PP = cb_ref.shape[1]                   # per-pool-position plane width (384)
    POS = wbig_ref.shape[1] // PP          # 9 positions inside each 3x3 window

    # --- conv1 (3x3, pad=1, C_in=1) for all pool positions: ONE MXU matmul ---
    conv = jnp.dot(img_ref[...], wbig_ref[...],
                   preferred_element_type=jnp.float32)        # (bt, POS*PP)

    # --- MaxPool2d(3): 8 full-block maxima over 128-lane-aligned plane slices ---
    pooled = conv[:, 0:PP]
    for p in range(1, POS):
        pooled = jnp.maximum(pooled, conv[:, p * PP:(p + 1) * PP])
    # bias + ReLU commute with max -> apply once on the pooled (bt, PP) block.
    feats = jnp.maximum(pooled + cb_ref[...], 0.0).astype(jnp.bfloat16)

    # --- MLP: fc_in -> fc1 -> fc2 -> fc_out ---
    # TODO(synk): nn.Dropout(0.6) is treated as inference-mode identity.
    h = jnp.maximum(jnp.dot(feats, win_ref[...],
                            preferred_element_type=jnp.float32) + bin_ref[...], 0.0)
    h = jnp.maximum(jnp.dot(h.astype(jnp.bfloat16), w1_ref[...],
                            preferred_element_type=jnp.float32) + b1_ref[...], 0.0)
    h = jnp.maximum(jnp.dot(h.astype(jnp.bfloat16), w2_ref[...],
                            preferred_element_type=jnp.float32) + b2_ref[...], 0.0)
    out_ref[...] = (jnp.dot(h.astype(jnp.bfloat16), wout_ref[...],
                            preferred_element_type=jnp.float32) + bout_ref[...])


def init_params(key, num_actions=6, num_features=32, hidden=(256, 128, 64)):
    """Deterministic init mimicking PyTorch default U(-1/sqrt(fan_in), +)."""
    ks = jax.random.split(key, 10)

    def u(k, shape, fan_in):
        b = 1.0 / np.sqrt(fan_in)
        return jax.random.uniform(k, shape, jnp.float32, -b, b)

    fin = num_features * 3 * 3
    return {
        "conv_w":   u(ks[0], (num_features, 1, 3, 3), 9),            # OIHW
        "conv_b":   u(ks[1], (num_features,), 9),
        "fc_in_w":  u(ks[2], (hidden[0], fin), fin),                  # (out, in)
        "fc_in_b":  u(ks[3], (hidden[0],), fin),
        "fc1_w":    u(ks[4], (hidden[1], hidden[0]), hidden[0]),
        "fc1_b":    u(ks[5], (hidden[1],), hidden[0]),
        "fc2_w":    u(ks[6], (hidden[2], hidden[1]), hidden[1]),
        "fc2_b":    u(ks[7], (hidden[2],), hidden[1]),
        "fc_out_w": u(ks[8], (num_actions, hidden[2]), hidden[2]),
        "fc_out_b": u(ks[9], (num_actions,), hidden[2]),
    }


@functools.lru_cache(maxsize=None)
def _conv_sel_indices(C, PH, PW, Wp, lin_pad, plane_pad):
    """Static gather indices that scatter the 9*C conv taps into the
    (lin_pad, 9*plane_pad) conv-as-matmul weight.  Value C*9 means 'zero'."""
    sel = np.full((lin_pad, 9 * plane_pad), C * 9, dtype=np.int32)
    tap = np.arange(C, dtype=np.int32) * 9
    for p in range(9):                         # position inside the 3x3 window
        pi, pj = p // 3, p % 3
        for w in range(PH * PW):               # pooled window
            i, j = 3 * (w // PW) + pi, 3 * (w % PW) + pj      # conv output pos
            base = p * plane_pad + w * C
            for di in range(3):
                for dj in range(3):
                    sel[(i + di) * Wp + (j + dj), base:base + C] = tap + di * 3 + dj
    return sel


def _conv_matmul_params(conv_w, conv_b, PH, PW, Wp, lin_pad, plane_pad):
    """Fold conv3x3(pad=1), the 9 pool positions and the (window, channel) lane
    layout into one (lin_pad, 9*plane_pad) matmul weight + (1, plane_pad) bias."""
    C = conv_w.shape[0]
    sel = _conv_sel_indices(C, PH, PW, Wp, lin_pad, plane_pad)
    taps = jnp.concatenate([conv_w.reshape(C * 9),
                            jnp.zeros((1,), conv_w.dtype)])           # last = 0
    wbig = jnp.take(taps, sel, axis=0).astype(jnp.bfloat16)
    cbig = jnp.concatenate(
        [jnp.tile(conv_b, PH * PW),
         jnp.zeros((plane_pad - PH * PW * C,), conv_b.dtype)])
    return wbig, cbig[None, :].astype(jnp.float32)


def _prep_mlp_params(params, C, NW, plane_pad):
    """fc weights transposed for right-multiplication; fc_in rows permuted from
    PyTorch's (channel, window) flatten order to the kernel's (window, channel)
    lane order and zero-padded to plane_pad; fc_out padded to 128 lanes."""
    H0 = params["fc_in_w"].shape[0]
    A = params["fc_out_w"].shape[0]
    win = params["fc_in_w"].reshape(H0, C, NW)
    win = jnp.transpose(win, (2, 1, 0)).reshape(NW * C, H0)
    win = jnp.pad(win, ((0, plane_pad - NW * C), (0, 0))).astype(jnp.bfloat16)
    bin_ = params["fc_in_b"][None, :].astype(jnp.float32)
    w1 = params["fc1_w"].T.astype(jnp.bfloat16)
    b1 = params["fc1_b"][None, :].astype(jnp.float32)
    w2 = params["fc2_w"].T.astype(jnp.bfloat16)
    b2 = params["fc2_b"][None, :].astype(jnp.float32)
    wout = jnp.pad(params["fc_out_w"].T, ((0, 0), (0, LANE - A))).astype(jnp.bfloat16)
    bout = jnp.pad(params["fc_out_b"], (0, LANE - A))[None, :].astype(jnp.float32)
    return win, bin_, w1, b1, w2, b2, wout, bout, A


@functools.partial(jax.jit, static_argnames=("batches", "batch_tile"))
def dqn_forward_pallas(x, params, batches=True, batch_tile=256):
    # ----- glue: replicate the PyTorch forward preamble (channel 0, f32) -----
    if batches:
        xs = x[:, 0, :, :]                       # NCHW -> (B, H, W)
    else:
        xs = x[0, :, :][None, :, :]              # non-batched input is (C, H, W)
    xs = xs.astype(jnp.float32)
    B, H, W = xs.shape
    C = params["conv_w"].shape[0]
    PH, PW = H // 3, W // 3                      # MaxPool2d(3): stride 3, floor
    NW, POS = PH * PW, 9
    H0 = params["fc_in_w"].shape[0]
    if params["fc_in_w"].shape[1] != C * NW:
        raise ValueError("fc_in width does not match conv/pool geometry")

    Hp, Wp = H + 2, W + 2                        # conv padding=1
    LIN = _round_up(Hp * Wp, LANE)               # lane-dense padded-image width
    PP = _round_up(NW * C, LANE)                 # per-pool-position plane width

    wbig, cbig = _conv_matmul_params(params["conv_w"], params["conv_b"],
                                     PH, PW, Wp, LIN, PP)
    win, bin_, w1, b1, w2, b2, wout, bout, A = _prep_mlp_params(params, C, NW, PP)

    # batch tiling (>=8 rows for sublane alignment; use batch_tile=128 on v7x
    # when B is large so both TensorCores get grid steps)
    bt = min(_round_up(batch_tile, 8), _round_up(B, 8))
    Bp = _round_up(B, bt)
    nt = Bp // bt

    # ----- glue: zero-pad spatially, flatten lane-dense, cast matmul operand -----
    xp = jnp.pad(xs, ((0, Bp - B), (1, 1), (1, 1)))
    img = xp.reshape(Bp, Hp * Wp)
    img = jnp.pad(img, ((0, 0), (0, LIN - Hp * Wp))).astype(jnp.bfloat16)

    resident = pl.BlockSpec(memory_space=pltpu.MemorySpace.VMEM)   # whole array
    grid_spec = pltpu.PrefetchScalarGridSpec(
        num_scalar_prefetch=0,
        grid=(nt,),
        in_specs=[pl.BlockSpec((bt, LIN), lambda i: (i, 0))] + [resident] * 10,
        out_specs=pl.BlockSpec((bt, LANE), lambda i: (i, 0)),
    )

    weights = (wbig, cbig, win, bin_, w1, b1, w2, b2, wout, bout)
    flops = 2 * Bp * (LIN * POS * PP + PP * H0
                      + w1.shape[0] * w1.shape[1]
                      + w2.shape[0] * w2.shape[1]
                      + wout.shape[0] * wout.shape[1])
    bytes_accessed = (int(img.size) * img.dtype.itemsize + Bp * LANE * 4
                      + sum(int(w.size) * w.dtype.itemsize for w in weights))
    cost = pl.CostEstimate(flops=int(flops), transcendentals=0,
                           bytes_accessed=int(bytes_accessed))

    out = pl.pallas_call(
        dqn_kernel,
        out_shape=jax.ShapeDtypeStruct((Bp, LANE), jnp.float32),
        grid_spec=grid_spec,
        compiler_params=pltpu.CompilerParams(
            dimension_semantics=("parallel",),
            vmem_limit_bytes=32 * 1024 * 1024),
        cost_estimate=cost,
    )(img, *weights)

    return out[:B, :A]


def dqn_forward_ref(x, params, batches=True):
    """Pure-JAX f32 reference matching the PyTorch forward (eval mode)."""
    xs = x[:, 0, :, :] if batches else x[0, :, :][None]
    xs = xs.astype(jnp.float32)[:, None, :, :]                    # NCHW
    conv = lax.conv_general_dilated(
        xs, params["conv_w"], window_strides=(1, 1), padding=((1, 1), (1, 1)),
        dimension_numbers=("NCHW", "OIHW", "NCHW"))
    conv = jnp.maximum(conv + params["conv_b"][None, :, None, None], 0.0)
    pooled = lax.reduce_window(conv, -jnp.inf, lax.max,
                               (1, 1, 3, 3), (1, 1, 3, 3), "VALID")
    flat = pooled.reshape(pooled.shape[0], -1)                    # c-major flatten
    h = jnp.maximum(flat @ params["fc_in_w"].T + params["fc_in_b"], 0.0)
    h = jnp.maximum(h @ params["fc1_w"].T + params["fc1_b"], 0.0)
    h = jnp.maximum(h @ params["fc2_w"].T + params["fc2_b"], 0.0)
    return h @ params["fc_out_w"].T + params["fc_out_b"]


if __name__ == "__main__":
    key = jax.random.PRNGKey(0)
    kx, kp = jax.random.split(key)

    num_actions = 6
    params = init_params(kp, num_actions=num_actions)

    # fc_in expects 32*3*3 features => spatial 9x9 input (3x3 pool of conv out).
    x = jax.random.uniform(kx, (2, 1, 9, 9), dtype=jnp.float32)   # NCHW

    out = jax.block_until_ready(dqn_forward_pallas(x, params, batches=True))
    ref = dqn_forward_ref(x, params, batches=True)

    assert out.shape == (2, num_actions)
    if not np.allclose(np.asarray(out), np.asarray(ref), atol=5e-2, rtol=5e-2):
        raise AssertionError(
            f"mismatch vs reference, max |diff| = "
            f"{np.max(np.abs(np.asarray(out) - np.asarray(ref)))}")
    print("KERNEL_OK")
</pallas_src>

<mosaic_0001>
module attributes {stable_mosaic.version = 11 : i64} {
  func.func @dqn_kernel(%arg0: i32, %arg1: memref<8x128xbf16, #tpu.memory_space<vmem>>, %arg2: memref<128x3456xbf16, #tpu.memory_space<vmem>>, %arg3: memref<1x384xf32, #tpu.memory_space<vmem>>, %arg4: memref<384x256xbf16, #tpu.memory_space<vmem>>, %arg5: memref<1x256xf32, #tpu.memory_space<vmem>>, %arg6: memref<256x128xbf16, #tpu.memory_space<vmem>>, %arg7: memref<1x128xf32, #tpu.memory_space<vmem>>, %arg8: memref<128x64xbf16, #tpu.memory_space<vmem>>, %arg9: memref<1x64xf32, #tpu.memory_space<vmem>>, %arg10: memref<64x128xbf16, #tpu.memory_space<vmem>>, %arg11: memref<1x128xf32, #tpu.memory_space<vmem>>, %arg12: memref<8x128xf32, #tpu.memory_space<vmem>>) attributes {dimension_semantics = [#tpu.dimension_semantics<parallel>], iteration_bounds = array<i64: 1>, scalar_prefetch = 0 : i64, scratch_operands = 0 : i64, tpu.core_type = #tpu.core_type<tc>, window_params = [{transform_indices = @transform_0, window_bounds = array<i64: 8, 128>}, {pipeline_mode = #tpu.pipeline_mode<synchronous>, transform_indices = @transform_1, window_bounds = array<i64: 128, 3456>}, {pipeline_mode = #tpu.pipeline_mode<synchronous>, transform_indices = @transform_2, window_bounds = array<i64: 1, 384>}, {pipeline_mode = #tpu.pipeline_mode<synchronous>, transform_indices = @transform_3, window_bounds = array<i64: 384, 256>}, {pipeline_mode = #tpu.pipeline_mode<synchronous>, transform_indices = @transform_4, window_bounds = array<i64: 1, 256>}, {pipeline_mode = #tpu.pipeline_mode<synchronous>, transform_indices = @transform_5, window_bounds = array<i64: 256, 128>}, {pipeline_mode = #tpu.pipeline_mode<synchronous>, transform_indices = @transform_6, window_bounds = array<i64: 1, 128>}, {pipeline_mode = #tpu.pipeline_mode<synchronous>, transform_indices = @transform_7, window_bounds = array<i64: 128, 64>}, {pipeline_mode = #tpu.pipeline_mode<synchronous>, transform_indices = @transform_8, window_bounds = array<i64: 1, 64>}, {pipeline_mode = #tpu.pipeline_mode<synchronous>, transform_indices = @transform_9, window_bounds = array<i64: 64, 128>}, {pipeline_mode = #tpu.pipeline_mode<synchronous>, transform_indices = @transform_10, window_bounds = array<i64: 1, 128>}, {transform_indices = @transform_11, window_bounds = array<i64: 8, 128>}]} {
    %c0 = arith.constant 0 : index
    %c0_0 = arith.constant 0 : index
    %0 = vector.load %arg1[%c0, %c0_0] : memref<8x128xbf16, #tpu.memory_space<vmem>>, vector<8x128xbf16>
    %c0_1 = arith.constant 0 : index
    %c0_2 = arith.constant 0 : index
    %1 = vector.load %arg2[%c0_1, %c0_2] : memref<128x3456xbf16, #tpu.memory_space<vmem>>, vector<128x3456xbf16>
    %cst = arith.constant dense<0.000000e+00> : vector<8x3456xf32>
    %2 = tpu.matmul %0, %1, %cst {dimension_numbers = #tpu.dot_dimension_numbers<[1], [0], [0], [1], [0, 0, 1, 1], [], []>} : vector<8x128xbf16>, vector<128x3456xbf16>, vector<8x3456xf32> -> vector<8x3456xf32>
    %3 = vector.extract_strided_slice %2 {offsets = [0, 0], sizes = [8, 384], strides = [1, 1]} : vector<8x3456xf32> to vector<8x384xf32>
    %4 = vector.extract_strided_slice %2 {offsets = [0, 384], sizes = [8, 384], strides = [1, 1]} : vector<8x3456xf32> to vector<8x384xf32>
    %5 = arith.maximumf %3, %4 : vector<8x384xf32>
    %6 = vector.extract_strided_slice %2 {offsets = [0, 768], sizes = [8, 384], strides = [1, 1]} : vector<8x3456xf32> to vector<8x384xf32>
    %7 = arith.maximumf %5, %6 : vector<8x384xf32>
    %8 = vector.extract_strided_slice %2 {offsets = [0, 1152], sizes = [8, 384], strides = [1, 1]} : vector<8x3456xf32> to vector<8x384xf32>
    %9 = arith.maximumf %7, %8 : vector<8x384xf32>
    %10 = vector.extract_strided_slice %2 {offsets = [0, 1536], sizes = [8, 384], strides = [1, 1]} : vector<8x3456xf32> to vector<8x384xf32>
    %11 = arith.maximumf %9, %10 : vector<8x384xf32>
    %12 = vector.extract_strided_slice %2 {offsets = [0, 1920], sizes = [8, 384], strides = [1, 1]} : vector<8x3456xf32> to vector<8x384xf32>
    %13 = arith.maximumf %11, %12 : vector<8x384xf32>
    %14 = vector.extract_strided_slice %2 {offsets = [0, 2304], sizes = [8, 384], strides = [1, 1]} : vector<8x3456xf32> to vector<8x384xf32>
    %15 = arith.maximumf %13, %14 : vector<8x384xf32>
    %16 = vector.extract_strided_slice %2 {offsets = [0, 2688], sizes = [8, 384], strides = [1, 1]} : vector<8x3456xf32> to vector<8x384xf32>
    %17 = arith.maximumf %15, %16 : vector<8x384xf32>
    %18 = vector.extract_strided_slice %2 {offsets = [0, 3072], sizes = [8, 384], strides = [1, 1]} : vector<8x3456xf32> to vector<8x384xf32>
    %19 = arith.maximumf %17, %18 : vector<8x384xf32>
    %c0_3 = arith.constant 0 : index
    %c0_4 = arith.constant 0 : index
    %20 = vector.load %arg3[%c0_3, %c0_4] : memref<1x384xf32, #tpu.memory_space<vmem>>, vector<1x384xf32>
    %21 = vector.broadcast %20 : vector<1x384xf32> to vector<8x384xf32>
    %22 = arith.addf %19, %21 : vector<8x384xf32>
    %cst_5 = arith.constant 0.000000e+00 : f32
    %23 = vector.broadcast %cst_5 : f32 to vector<8x384xf32>
    %24 = arith.maximumf %22, %23 : vector<8x384xf32>
    %25 = arith.truncf %24 : vector<8x384xf32> to vector<8x384xbf16>
    %c0_6 = arith.constant 0 : index
    %c0_7 = arith.constant 0 : index
    %26 = vector.load %arg4[%c0_6, %c0_7] : memref<384x256xbf16, #tpu.memory_space<vmem>>, vector<384x256xbf16>
    %cst_8 = arith.constant dense<0.000000e+00> : vector<8x256xf32>
    %27 = tpu.matmul %25, %26, %cst_8 {dimension_numbers = #tpu.dot_dimension_numbers<[1], [0], [0], [1], [0, 0, 1, 1], [], []>} : vector<8x384xbf16>, vector<384x256xbf16>, vector<8x256xf32> -> vector<8x256xf32>
    %c0_9 = arith.constant 0 : index
    %c0_10 = arith.constant 0 : index
    %28 = vector.load %arg5[%c0_9, %c0_10] : memref<1x256xf32, #tpu.memory_space<vmem>>, vector<1x256xf32>
    %29 = vector.broadcast %28 : vector<1x256xf32> to vector<8x256xf32>
    %30 = arith.addf %27, %29 : vector<8x256xf32>
    %cst_11 = arith.constant 0.000000e+00 : f32
    %31 = vector.broadcast %cst_11 : f32 to vector<8x256xf32>
    %32 = arith.maximumf %30, %31 : vector<8x256xf32>
    %33 = arith.truncf %32 : vector<8x256xf32> to vector<8x256xbf16>
    %c0_12 = arith.constant 0 : index
    %c0_13 = arith.constant 0 : index
    %34 = vector.load %arg6[%c0_12, %c0_13] : memref<256x128xbf16, #tpu.memory_space<vmem>>, vector<256x128xbf16>
    %cst_14 = arith.constant dense<0.000000e+00> : vector<8x128xf32>
    %35 = tpu.matmul %33, %34, %cst_14 {dimension_numbers = #tpu.dot_dimension_numbers<[1], [0], [0], [1], [0, 0, 1, 1], [], []>} : vector<8x256xbf16>, vector<256x128xbf16>, vector<8x128xf32> -> vector<8x128xf32>
    %c0_15 = arith.constant 0 : index
    %c0_16 = arith.constant 0 : index
    %36 = vector.load %arg7[%c0_15, %c0_16] : memref<1x128xf32, #tpu.memory_space<vmem>>, vector<1x128xf32>
    %37 = vector.broadcast %36 : vector<1x128xf32> to vector<8x128xf32>
    %38 = arith.addf %35, %37 : vector<8x128xf32>
    %cst_17 = arith.constant 0.000000e+00 : f32
    %39 = vector.broadcast %cst_17 : f32 to vector<8x128xf32>
    %40 = arith.maximumf %38, %39 : vector<8x128xf32>
    %41 = arith.truncf %40 : vector<8x128xf32> to vector<8x128xbf16>
    %c0_18 = arith.constant 0 : index
    %c0_19 = arith.constant 0 : index
    %42 = vector.load %arg8[%c0_18, %c0_19] : memref<128x64xbf16, #tpu.memory_space<vmem>>, vector<128x64xbf16>
    %cst_20 = arith.constant dense<0.000000e+00> : vector<8x64xf32>
    %43 = tpu.matmul %41, %42, %cst_20 {dimension_numbers = #tpu.dot_dimension_numbers<[1], [0], [0], [1], [0, 0, 1, 1], [], []>} : vector<8x128xbf16>, vector<128x64xbf16>, vector<8x64xf32> -> vector<8x64xf32>
    %c0_21 = arith.constant 0 : index
    %c0_22 = arith.constant 0 : index
    %44 = vector.load %arg9[%c0_21, %c0_22] : memref<1x64xf32, #tpu.memory_space<vmem>>, vector<1x64xf32>
    %45 = vector.broadcast %44 : vector<1x64xf32> to vector<8x64xf32>
    %46 = arith.addf %43, %45 : vector<8x64xf32>
    %cst_23 = arith.constant 0.000000e+00 : f32
    %47 = vector.broadcast %cst_23 : f32 to vector<8x64xf32>
    %48 = arith.maximumf %46, %47 : vector<8x64xf32>
    %49 = arith.truncf %48 : vector<8x64xf32> to vector<8x64xbf16>
    %c0_24 = arith.constant 0 : index
    %c0_25 = arith.constant 0 : index
    %50 = vector.load %arg10[%c0_24, %c0_25] : memref<64x128xbf16, #tpu.memory_space<vmem>>, vector<64x128xbf16>
    %cst_26 = arith.constant dense<0.000000e+00> : vector<8x128xf32>
    %51 = tpu.matmul %49, %50, %cst_26 {dimension_numbers = #tpu.dot_dimension_numbers<[1], [0], [0], [1], [0, 0, 1, 1], [], []>} : vector<8x64xbf16>, vector<64x128xbf16>, vector<8x128xf32> -> vector<8x128xf32>
    %c0_27 = arith.constant 0 : index
    %c0_28 = arith.constant 0 : index
    %52 = vector.load %arg11[%c0_27, %c0_28] : memref<1x128xf32, #tpu.memory_space<vmem>>, vector<1x128xf32>
    %53 = vector.broadcast %52 : vector<1x128xf32> to vector<8x128xf32>
    %54 = arith.addf %51, %53 : vector<8x128xf32>
    %c0_29 = arith.constant 0 : index
    %c0_30 = arith.constant 0 : index
    %55 = vector.load %arg12[%c0_29, %c0_30] : memref<8x128xf32, #tpu.memory_space<vmem>>, vector<8x128xf32>
    tpu.vector_store %arg12[%c0_29, %c0_30], %54 {strides = array<i32>} : memref<8x128xf32, #tpu.memory_space<vmem>>, vector<8x128xf32>,
    return
  }
  func.func @transform_0(%arg0: i32) -> (i32, i32) {
    %c0_i32 = arith.constant 0 : i32
    %c0_i32_0 = arith.constant 0 : i32
    return %arg0, %c0_i32 : i32, i32
  }
  func.func @transform_1(%arg0: i32) -> (i32, i32) {
    %c0_i32 = arith.constant 0 : i32
    %c0_i32_0 = arith.constant 0 : i32
    %c0_i32_1 = arith.constant 0 : i32
    return %c0_i32, %c0_i32_0 : i32, i32
  }
  func.func @transform_2(%arg0: i32) -> (i32, i32) {
    %c0_i32 = arith.constant 0 : i32
    %c0_i32_0 = arith.constant 0 : i32
    %c0_i32_1 = arith.constant 0 : i32
    return %c0_i32, %c0_i32_0 : i32, i32
  }
  func.func @transform_3(%arg0: i32) -> (i32, i32) {
    %c0_i32 = arith.constant 0 : i32
    %c0_i32_0 = arith.constant 0 : i32
    %c0_i32_1 = arith.constant 0 : i32
    return %c0_i32, %c0_i32_0 : i32, i32
  }
  func.func @transform_4(%arg0: i32) -> (i32, i32) {
    %c0_i32 = arith.constant 0 : i32
    %c0_i32_0 = arith.constant 0 : i32
    %c0_i32_1 = arith.constant 0 : i32
    return %c0_i32, %c0_i32_0 : i32, i32
  }
  func.func @transform_5(%arg0: i32) -> (i32, i32) {
    %c0_i32 = arith.constant 0 : i32
    %c0_i32_0 = arith.constant 0 : i32
    %c0_i32_1 = arith.constant 0 : i32
    return %c0_i32, %c0_i32_0 : i32, i32
  }
  func.func @transform_6(%arg0: i32) -> (i32, i32) {
    %c0_i32 = arith.constant 0 : i32
    %c0_i32_0 = arith.constant 0 : i32
    %c0_i32_1 = arith.constant 0 : i32
    return %c0_i32, %c0_i32_0 : i32, i32
  }
  func.func @transform_7(%arg0: i32) -> (i32, i32) {
    %c0_i32 = arith.constant 0 : i32
    %c0_i32_0 = arith.constant 0 : i32
    %c0_i32_1 = arith.constant 0 : i32
    return %c0_i32, %c0_i32_0 : i32, i32
  }
  func.func @transform_8(%arg0: i32) -> (i32, i32) {
    %c0_i32 = arith.constant 0 : i32
    %c0_i32_0 = arith.constant 0 : i32
    %c0_i32_1 = arith.constant 0 : i32
    return %c0_i32, %c0_i32_0 : i32, i32
  }
  func.func @transform_9(%arg0: i32) -> (i32, i32) {
    %c0_i32 = arith.constant 0 : i32
    %c0_i32_0 = arith.constant 0 : i32
    %c0_i32_1 = arith.constant 0 : i32
    return %c0_i32, %c0_i32_0 : i32, i32
  }
  func.func @transform_10(%arg0: i32) -> (i32, i32) {
    %c0_i32 = arith.constant 0 : i32
    %c0_i32_0 = arith.constant 0 : i32
    %c0_i32_1 = arith.constant 0 : i32
    return %c0_i32, %c0_i32_0 : i32, i32
  }
  func.func @transform_11(%arg0: i32) -> (i32, i32) {
    %c0_i32 = arith.constant 0 : i32
    %c0_i32_0 = arith.constant 0 : i32
    return %arg0, %c0_i32 : i32, i32
  }
}

</mosaic_0001>

<llo_original>
// kernel: tile.8
$region0: #{tile.8}
  #allocation0 [shape = 's32[1]{0}', space=sflag, size = 0x4, scoped, tag = 'scoped memory for tile.8']
  %s0 = inlined_call_operand.vmem [shape: f32[32], index: 0, kind: input, shape index: {}]
  %s1 = inlined_call_operand.vmem [shape: f32[9,32], index: 1, kind: output, shape index: {}]
  // Predicated region
  $region2: #{tile.8} parent=0 // pred_check
    _
  $region3: #{tile.8} parent=0 // pred_check_branch
    %3 = sbr.rel (0) target = $region5
  $region4: #{tile.8} parent=0 // pred_region
    _
  $region5: #{tile.8} parent=0 // pred_fallthru
    _
  %v4 = vld [vmem:[%s0] ss:$0 sm:$0xff]
  %5 = vst [vmem:[%s1] sm:$0xff] %v4
  %s6 = scalar_lea.vmem %s1, 8
  %7 = vst [vmem:[%s6] sm:$0xff] %v4

// kernel: tile.9
$region0: #{tile.9}
  %s0 = inlined_call_operand.vmem [shape: f32[9,32], index: 0, kind: input, shape index: {}]
  %s1 = inlined_call_operand.vmem [shape: f32[288], index: 1, kind: output, shape index: {}]
  $region1: #{tile.9} parent=0
    #allocation0 [shape = 'u8[4096]{0}', space=vmem, size = 0x1000, scoped, tag = 'scoped mem for output reshape']
    %v2 = vld [vmem:[%s0] ss:$4 sm:$0x7]
    %vm3 = vcmask 261120
    %4 = vst.msk [vmem:[#allocation0] sm:$0x7] %vm3, %v2
    %s5 = scalar_lea.vmem %s0, 3
    %s6 = smov 3
    %v7 = vld [vmem:[%s5] ss:$4 sm:%s6]
    %8 = vrot.lane.b32.xlu0 %v7, 96
    %v9 = vpop.permute.xlu0 %8
    %vm10 = vcmask 1048320
    %11 = vst.msk [vmem:[#allocation0] sm:$0x3] %vm10, %v9
    %s12 = scalar_lea.vmem %s0, 2
    %s13 = smov 3
    %v14 = vld [vmem:[%s12] ss:$4 sm:%s13]
    %15 = vrot.lane.b32.xlu0 %v14, 64
    %v16 = vpop.permute.xlu0 %15
    %vm17 = vcmask 785920
    %18 = vst.msk [vmem:[#allocation0] sm:$0x3] %vm17, %v16
    %s19 = scalar_lea.vmem %s0, 1
    %s20 = smov 3
    %v21 = vld [vmem:[%s19] ss:$4 sm:%s20]
    %22 = vrot.lane.b32.xlu0 %v21, 32
    %v23 = vpop.permute.xlu0 %22
    %vm24 = vcmask 523520
    %25 = vst.msk [vmem:[#allocation0] sm:$0x3] %vm24, %v23
    %s27 = ssub.s32 16, 1
    %v28 = vld [vmem:[#allocation0] sm:%s27]
    %s30 = ssub.s32 16, 1
    %31 = vst [vmem:[%s1] sm:%s30] %v28

// kernel: dqn_forward_pallas.1
$region0: #{dqn_forward_pallas.1}
  #allocation0 [shape = 'u32[]', space=smem, size = 0x4, offset = 0x4, fixed_abs, tag = 'smem constant byte address 0x4 - core index']
  #allocation1 [shape = 'u32[72,128]{1,0:T(1,128)}', space=vmem, size = 0x9000, scoped, tag = 'internal scratch']
  %s0 = inlined_call_operand.vmem [shape: bf16[8,128], index: 0, kind: input, shape index: {}]
  %s1 = inlined_call_operand.vmem [shape: bf16[128,3456], index: 1, kind: input, shape index: {}]
  %s2 = inlined_call_operand.vmem [shape: f32[1,384], index: 2, kind: input, shape index: {}]
  %s3 = inlined_call_operand.vmem [shape: bf16[384,256], index: 3, kind: input, shape index: {}]
  %s4 = inlined_call_operand.vmem [shape: f32[1,256], index: 4, kind: input, shape index: {}]
  %s5 = inlined_call_operand.vmem [shape: bf16[256,128], index: 5, kind: input, shape index: {}]
  %s6 = inlined_call_operand.vmem [shape: f32[1,128], index: 6, kind: input, shape index: {}]
  %s7 = inlined_call_operand.vmem [shape: bf16[128,64], index: 7, kind: input, shape index: {}]
  %s8 = inlined_call_operand.vmem [shape: f32[1,64], index: 8, kind: input, shape index: {}]
  %s9 = inlined_call_operand.vmem [shape: bf16[64,128], index: 9, kind: input, shape index: {}]
  %s10 = inlined_call_operand.vmem [shape: f32[1,128], index: 10, kind: input, shape index: {}]
  %s11 = inlined_call_operand.vmem [shape: f32[8,128], index: 11, kind: output, shape index: {}]
  %s12 = sld [smem:[#allocation0]]
  $region54: #{dqn_forward_pallas.1} parent=0
    _
  %s14 = ssub.s32 1, %s12
  %s15 = scalar_select 0, %s14, %s12
  // Predicated region
  $region2: #{dqn_forward_pallas.1} parent=0 // pred_check
    _
  $region3: #{dqn_forward_pallas.1} parent=0 // pred_check_branch
    %17 = sbr.rel (0) target = $region5
  $region4: #{dqn_forward_pallas.1} parent=0 // pred_region
    _
  $region5: #{dqn_forward_pallas.1} parent=0 // pred_fallthru
    _
  // Predicated region
  $region6: #{dqn_forward_pallas.1} parent=0 // pred_check
    _
  $region7: #{dqn_forward_pallas.1} parent=0 // pred_check_branch
    %19 = sbr.rel (0) target = $region9
  $region8: #{dqn_forward_pallas.1} parent=0 // pred_region
    _
  $region9: #{dqn_forward_pallas.1} parent=0 // pred_fallthru
    _
  // Predicated region
  $region10: #{dqn_forward_pallas.1} parent=0 // pred_check
    _
  $region11: #{dqn_forward_pallas.1} parent=0 // pred_check_branch
    %21 = sbr.rel (0) target = $region13
  $region12: #{dqn_forward_pallas.1} parent=0 // pred_region
    _
  $region13: #{dqn_forward_pallas.1} parent=0 // pred_fallthru
    _
  // Predicated region
  $region14: #{dqn_forward_pallas.1} parent=0 // pred_check
    _
  $region15: #{dqn_forward_pallas.1} parent=0 // pred_check_branch
    %23 = sbr.rel (0) target = $region17
  $region16: #{dqn_forward_pallas.1} parent=0 // pred_region
    _
  $region17: #{dqn_forward_pallas.1} parent=0 // pred_fallthru
    _
  // Predicated region
  $region18: #{dqn_forward_pallas.1} parent=0 // pred_check
    _
  $region19: #{dqn_forward_pallas.1} parent=0 // pred_check_branch
    %25 = sbr.rel (0) target = $region21
  $region20: #{dqn_forward_pallas.1} parent=0 // pred_region
    _
  $region21: #{dqn_forward_pallas.1} parent=0 // pred_fallthru
    _
  // Predicated region
  $region22: #{dqn_forward_pallas.1} parent=0 // pred_check
    _
  $region23: #{dqn_forward_pallas.1} parent=0 // pred_check_branch
    %27 = sbr.rel (0) target = $region25
  $region24: #{dqn_forward_pallas.1} parent=0 // pred_region
    _
  $region25: #{dqn_forward_pallas.1} parent=0 // pred_fallthru
    _
  // Predicated region
  $region26: #{dqn_forward_pallas.1} parent=0 // pred_check
    _
  $region27: #{dqn_forward_pallas.1} parent=0 // pred_check_branch
    %29 = sbr.rel (0) target = $region29
  $region28: #{dqn_forward_pallas.1} parent=0 // pred_region
    _
  $region29: #{dqn_forward_pallas.1} parent=0 // pred_fallthru
    _
  // Predicated region
  $region30: #{dqn_forward_pallas.1} parent=0 // pred_check
    _
  $region31: #{dqn_forward_pallas.1} parent=0 // pred_check_branch
    %31 = sbr.rel (0) target = $region33
  $region32: #{dqn_forward_pallas.1} parent=0 // pred_region
    _
  $region33: #{dqn_forward_pallas.1} parent=0 // pred_fallthru
    _
  // Predicated region
  $region34: #{dqn_forward_pallas.1} parent=0 // pred_check
    _
  $region35: #{dqn_forward_pallas.1} parent=0 // pred_check_branch
    %33 = sbr.rel (0) target = $region37
  $region36: #{dqn_forward_pallas.1} parent=0 // pred_region
    _
  $region37: #{dqn_forward_pallas.1} parent=0 // pred_fallthru
    _
  // Predicated region
  $region38: #{dqn_forward_pallas.1} parent=0 // pred_check
    _
  $region39: #{dqn_forward_pallas.1} parent=0 // pred_check_branch
    %35 = sbr.rel (0) target = $region41
  $region40: #{dqn_forward_pallas.1} parent=0 // pred_region
    _
  $region41: #{dqn_forward_pallas.1} parent=0 // pred_fallthru
    _
  // Predicated region
  $region42: #{dqn_forward_pallas.1} parent=0 // pred_check
    _
  $region43: #{dqn_forward_pallas.1} parent=0 // pred_check_branch
    %37 = sbr.rel (0) target = $region45
  $region44: #{dqn_forward_pallas.1} parent=0 // pred_region
    _
  $region45: #{dqn_forward_pallas.1} parent=0 // pred_fallthru
    _
  %v39 = vld [vmem:[%s0] sm:$0xf]
  %v40 = vld [vmem:[%s1] sm:$0xff]
  %v41 = vld [vmem:[%s1 + $0x8] sm:$0xff]
  %v42 = vld [vmem:[%s1 + $0x10] sm:$0xff]
  %v43 = vld [vmem:[%s1 + $0x18] sm:$0xff]
  %v44 = vld [vmem:[%s1 + $0x20] sm:$0xff]
  %v45 = vld [vmem:[%s1 + $0x28] sm:$0xff]
  %v46 = vld [vmem:[%s1 + $0x30] sm:$0xff]
  %v47 = vld [vmem:[%s1 + $0x38] sm:$0xff]
  %v48 = vld [vmem:[%s1 + $0x40] sm:$0xff]
  %v49 = vld [vmem:[%s1 + $0x48] sm:$0xff]
  %v50 = vld [vmem:[%s1 + $0x50] sm:$0xff]
  %v51 = vld [vmem:[%s1 + $0x58] sm:$0xff]
  %v52 = vld [vmem:[%s1 + $0x60] sm:$0xff]
  %v53 = vld [vmem:[%s1 + $0x68] sm:$0xf]
  %v54 = vld [vmem:[%s1 + $0x6c] sm:$0xff]
  %v55 = vld [vmem:[%s1 + $0x74] sm:$0xff]
  %v56 = vld [vmem:[%s1 + $0x7c] sm:$0xff]
  %v57 = vld [vmem:[%s1 + $0x84] sm:$0xff]
  %v58 = vld [vmem:[%s1 + $0x8c] sm:$0xff]
  %v59 = vld [vmem:[%s1 + $0x94] sm:$0xff]
  %v60 = vld [vmem:[%s1 + $0x9c] sm:$0xff]
  %v61 = vld [vmem:[%s1 + $0xa4] sm:$0xff]
  %v62 = vld [vmem:[%s1 + $0xac] sm:$0xff]
  %v63 = vld [vmem:[%s1 + $0xb4] sm:$0xff]
  %v64 = vld [vmem:[%s1 + $0xbc] sm:$0xff]
  %v65 = vld [vmem:[%s1 + $0xc4] sm:$0xff]
  %v66 = vld [vmem:[%s1 + $0xcc] sm:$0xff]
  %v67 = vld [vmem:[%s1 + $0xd4] sm:$0xf]
  %v68 = vld [vmem:[%s1 + $0xd8] sm:$0xff]
  %v69 = vld [vmem:[%s1 + $0xe0] sm:$0xff]
  %v70 = vld [vmem:[%s1 + $0xe8] sm:$0xff]
  %v71 = vld [vmem:[%s1 + $0xf0] sm:$0xff]
  %v72 = vld [vmem:[%s1 + $0xf8] sm:$0xff]
  %v73 = vld [vmem:[%s1 + $0x100] sm:$0xff]
  %v74 = vld [vmem:[%s1 + $0x108] sm:$0xff]
  %v75 = vld [vmem:[%s1 + $0x110] sm:$0xff]
  %v76 = vld [vmem:[%s1 + $0x118] sm:$0xff]
  %v77 = vld [vmem:[%s1 + $0x120] sm:$0xff]
  %v78 = vld [vmem:[%s1 + $0x128] sm:$0xff]
  %v79 = vld [vmem:[%s1 + $0x130] sm:$0xff]
  %v80 = vld [vmem:[%s1 + $0x138] sm:$0xff]
  %v81 = vld [vmem:[%s1 + $0x140] sm:$0xf]
  %v82 = vld [vmem:[%s1 + $0x144] sm:$0xff]
  %v83 = vld [vmem:[%s1 + $0x14c] sm:$0xff]
  %v84 = vld [vmem:[%s1 + $0x154] sm:$0xff]
  %v85 = vld [vmem:[%s1 + $0x15c] sm:$0xff]
  %v86 = vld [vmem:[%s1 + $0x164] sm:$0xff]
  %v87 = vld [vmem:[%s1 + $0x16c] sm:$0xff]
  %v88 = vld [vmem:[%s1 + $0x174] sm:$0xff]
  %v89 = vld [vmem:[%s1 + $0x17c] sm:$0xff]
  %v90 = vld [vmem:[%s1 + $0x184] sm:$0xff]
  %v91 = vld [vmem:[%s1 + $0x18c] sm:$0xff]
  %v92 = vld [vmem:[%s1 + $0x194] sm:$0xff]
  %v93 = vld [vmem:[%s1 + $0x19c] sm:$0xff]
  %v94 = vld [vmem:[%s1 + $0x1a4] sm:$0xff]
  %v95 = vld [vmem:[%s1 + $0x1ac] sm:$0xf]
  %v96 = vld [vmem:[%s1 + $0x1b0] sm:$0xff]
  %v97 = vld [vmem:[%s1 + $0x1b8] sm:$0xff]
  %v98 = vld [vmem:[%s1 + $0x1c0] sm:$0xff]
  %v99 = vld [vmem:[%s1 + $0x1c8] sm:$0xff]
  %v100 = vld [vmem:[%s1 + $0x1d0] sm:$0xff]
  %v101 = vld [vmem:[%s1 + $0x1d8] sm:$0xff]
  %v102 = vld [vmem:[%s1 + $0x1e0] sm:$0xff]
  %v103 = vld [vmem:[%s1 + $0x1e8] sm:$0xff]
  %v104 = vld [vmem:[%s1 + $0x1f0] sm:$0xff]
  %v105 = vld [vmem:[%s1 + $0x1f8] sm:$0xff]
  %v106 = vld [vmem:[%s1 + $0x200] sm:$0xff]
  %v107 = vld [vmem:[%s1 + $0x208] sm:$0xff]
  %v108 = vld [vmem:[%s1 + $0x210] sm:$0xff]
  %v109 = vld [vmem:[%s1 + $0x218] sm:$0xf]
  %v110 = vld [vmem:[%s1 + $0x21c] sm:$0xff]
  %v111 = vld [vmem:[%s1 + $0x224] sm:$0xff]
  %v112 = vld [vmem:[%s1 + $0x22c] sm:$0xff]
  %v113 = vld [vmem:[%s1 + $0x234] sm:$0xff]
  %v114 = vld [vmem:[%s1 + $0x23c] sm:$0xff]
  %v115 = vld [vmem:[%s1 + $0x244] sm:$0xff]
  %v116 = vld [vmem:[%s1 + $0x24c] sm:$0xff]
  %v117 = vld [vmem:[%s1 + $0x254] sm:$0xff]
  %v118 = vld [vmem:[%s1 + $0x25c] sm:$0xff]
  %v119 = vld [vmem:[%s1 + $0x264] sm:$0xff]
  %v120 = vld [vmem:[%s1 + $0x26c] sm:$0xff]
  %v121 = vld [vmem:[%s1 + $0x274] sm:$0xff]
  %v122 = vld [vmem:[%s1 + $0x27c] sm:$0xff]
  %v123 = vld [vmem:[%s1 + $0x284] sm:$0xf]
  %v124 = vld [vmem:[%s1 + $0x288] sm:$0xff]
  %v125 = vld [vmem:[%s1 + $0x290] sm:$0xff]
  %v126 = vld [vmem:[%s1 + $0x298] sm:$0xff]
  %v127 = vld [vmem:[%s1 + $0x2a0] sm:$0xff]
  %v128 = vld [vmem:[%s1 + $0x2a8] sm:$0xff]
  %v129 = vld [vmem:[%s1 + $0x2b0] sm:$0xff]
  %v130 = vld [vmem:[%s1 + $0x2b8] sm:$0xff]
  %v131 = vld [vmem:[%s1 + $0x2c0] sm:$0xff]
  %v132 = vld [vmem:[%s1 + $0x2c8] sm:$0xff]
  %v133 = vld [vmem:[%s1 + $0x2d0] sm:$0xff]
  %v134 = vld [vmem:[%s1 + $0x2d8] sm:$0xff]
  %v135 = vld [vmem:[%s1 + $0x2e0] sm:$0xff]
  %v136 = vld [vmem:[%s1 + $0x2e8] sm:$0xff]
  %v137 = vld [vmem:[%s1 + $0x2f0] sm:$0xf]
  %v138 = vld [vmem:[%s1 + $0x2f4] sm:$0xff]
  %v139 = vld [vmem:[%s1 + $0x2fc] sm:$0xff]
  %v140 = vld [vmem:[%s1 + $0x304] sm:$0xff]
  %v141 = vld [vmem:[%s1 + $0x30c] sm:$0xff]
  %v142 = vld [vmem:[%s1 + $0x314] sm:$0xff]
  %v143 = vld [vmem:[%s1 + $0x31c] sm:$0xff]
  %v144 = vld [vmem:[%s1 + $0x324] sm:$0xff]
  %v145 = vld [vmem:[%s1 + $0x32c] sm:$0xff]
  %v146 = vld [vmem:[%s1 + $0x334] sm:$0xff]
  %v147 = vld [vmem:[%s1 + $0x33c] sm:$0xff]
  %v148 = vld [vmem:[%s1 + $0x344] sm:$0xff]
  %v149 = vld [vmem:[%s1 + $0x34c] sm:$0xff]
  %v150 = vld [vmem:[%s1 + $0x354] sm:$0xff]
  %v151 = vld [vmem:[%s1 + $0x35c] sm:$0xf]
  %v152 = vld [vmem:[%s1 + $0x360] sm:$0xff]
  %v153 = vld [vmem:[%s1 + $0x368] sm:$0xff]
  %v154 = vld [vmem:[%s1 + $0x370] sm:$0xff]
  %v155 = vld [vmem:[%s1 + $0x378] sm:$0xff]
  %v156 = vld [vmem:[%s1 + $0x380] sm:$0xff]
  %v157 = vld [vmem:[%s1 + $0x388] sm:$0xff]
  %v158 = vld [vmem:[%s1 + $0x390] sm:$0xff]
  %v159 = vld [vmem:[%s1 + $0x398] sm:$0xff]
  %v160 = vld [vmem:[%s1 + $0x3a0] sm:$0xff]
  %v161 = vld [vmem:[%s1 + $0x3a8] sm:$0xff]
  %v162 = vld [vmem:[%s1 + $0x3b0] sm:$0xff]
  %v163 = vld [vmem:[%s1 + $0x3b8] sm:$0xff]
  %v164 = vld [vmem:[%s1 + $0x3c0] sm:$0xff]
  %v165 = vld [vmem:[%s1 + $0x3c8] sm:$0xf]
  %v166 = vld [vmem:[%s1 + $0x3cc] sm:$0xff]
  %v167 = vld [vmem:[%s1 + $0x3d4] sm:$0xff]
  %v168 = vld [vmem:[%s1 + $0x3dc] sm:$0xff]
  %v169 = vld [vmem:[%s1 + $0x3e4] sm:$0xff]
  %v170 = vld [vmem:[%s1 + $0x3ec] sm:$0xff]
  %v171 = vld [vmem:[%s1 + $0x3f4] sm:$0xff]
  %v172 = vld [vmem:[%s1 + $0x3fc] sm:$0xff]
  %v173 = vld [vmem:[%s1 + $0x404] sm:$0xff]
  %v174 = vld [vmem:[%s1 + $0x40c] sm:$0xff]
  %v175 = vld [vmem:[%s1 + $0x414] sm:$0xff]
  %v176 = vld [vmem:[%s1 + $0x41c] sm:$0xff]
  %v177 = vld [vmem:[%s1 + $0x424] sm:$0xff]
  %v178 = vld [vmem:[%s1 + $0x42c] sm:$0xff]
  %v179 = vld [vmem:[%s1 + $0x434] sm:$0xf]
  %v180 = vld [vmem:[%s1 + $0x438] sm:$0xff]
  %v181 = vld [vmem:[%s1 + $0x440] sm:$0xff]
  %v182 = vld [vmem:[%s1 + $0x448] sm:$0xff]
  %v183 = vld [vmem:[%s1 + $0x450] sm:$0xff]
  %v184 = vld [vmem:[%s1 + $0x458] sm:$0xff]
  %v185 = vld [vmem:[%s1 + $0x460] sm:$0xff]
  %v186 = vld [vmem:[%s1 + $0x468] sm:$0xff]
  %v187 = vld [vmem:[%s1 + $0x470] sm:$0xff]
  %v188 = vld [vmem:[%s1 + $0x478] sm:$0xff]
  %v189 = vld [vmem:[%s1 + $0x480] sm:$0xff]
  %v190 = vld [vmem:[%s1 + $0x488] sm:$0xff]
  %v191 = vld [vmem:[%s1 + $0x490] sm:$0xff]
  %v192 = vld [vmem:[%s1 + $0x498] sm:$0xff]
  %v193 = vld [vmem:[%s1 + $0x4a0] sm:$0xf]
  %v194 = vld [vmem:[%s1 + $0x4a4] sm:$0xff]
  %v195 = vld [vmem:[%s1 + $0x4ac] sm:$0xff]
  %v196 = vld [vmem:[%s1 + $0x4b4] sm:$0xff]
  %v197 = vld [vmem:[%s1 + $0x4bc] sm:$0xff]
  %v198 = vld [vmem:[%s1 + $0x4c4] sm:$0xff]
  %v199 = vld [vmem:[%s1 + $0x4cc] sm:$0xff]
  %v200 = vld [vmem:[%s1 + $0x4d4] sm:$0xff]
  %v201 = vld [vmem:[%s1 + $0x4dc] sm:$0xff]
  %v202 = vld [vmem:[%s1 + $0x4e4] sm:$0xff]
  %v203 = vld [vmem:[%s1 + $0x4ec] sm:$0xff]
  %v204 = vld [vmem:[%s1 + $0x4f4] sm:$0xff]
  %v205 = vld [vmem:[%s1 + $0x4fc] sm:$0xff]
  %v206 = vld [vmem:[%s1 + $0x504] sm:$0xff]
  %v207 = vld [vmem:[%s1 + $0x50c] sm:$0xf]
  %v208 = vld [vmem:[%s1 + $0x510] sm:$0xff]
  %v209 = vld [vmem:[%s1 + $0x518] sm:$0xff]
  %v210 = vld [vmem:[%s1 + $0x520] sm:$0xff]
  %v211 = vld [vmem:[%s1 + $0x528] sm:$0xff]
  %v212 = vld [vmem:[%s1 + $0x530] sm:$0xff]
  %v213 = vld [vmem:[%s1 + $0x538] sm:$0xff]
  %v214 = vld [vmem:[%s1 + $0x540] sm:$0xff]
  %v215 = vld [vmem:[%s1 + $0x548] sm:$0xff]
  %v216 = vld [vmem:[%s1 + $0x550] sm:$0xff]
  %v217 = vld [vmem:[%s1 + $0x558] sm:$0xff]
  %v218 = vld [vmem:[%s1 + $0x560] sm:$0xff]
  %v219 = vld [vmem:[%s1 + $0x568] sm:$0xff]
  %v220 = vld [vmem:[%s1 + $0x570] sm:$0xff]
  %v221 = vld [vmem:[%s1 + $0x578] sm:$0xf]
  %v222 = vld [vmem:[%s1 + $0x57c] sm:$0xff]
  %v223 = vld [vmem:[%s1 + $0x584] sm:$0xff]
  %v224 = vld [vmem:[%s1 + $0x58c] sm:$0xff]
  %v225 = vld [vmem:[%s1 + $0x594] sm:$0xff]
  %v226 = vld [vmem:[%s1 + $0x59c] sm:$0xff]
  %v227 = vld [vmem:[%s1 + $0x5a4] sm:$0xff]
  %v228 = vld [vmem:[%s1 + $0x5ac] sm:$0xff]
  %v229 = vld [vmem:[%s1 + $0x5b4] sm:$0xff]
  %v230 = vld [vmem:[%s1 + $0x5bc] sm:$0xff]
  %v231 = vld [vmem:[%s1 + $0x5c4] sm:$0xff]
  %v232 = vld [vmem:[%s1 + $0x5cc] sm:$0xff]
  %v233 = vld [vmem:[%s1 + $0x5d4] sm:$0xff]
  %v234 = vld [vmem:[%s1 + $0x5dc] sm:$0xff]
  %v235 = vld [vmem:[%s1 + $0x5e4] sm:$0xf]
  %v236 = vld [vmem:[%s1 + $0x5e8] sm:$0xff]
  %v237 = vld [vmem:[%s1 + $0x5f0] sm:$0xff]
  %v238 = vld [vmem:[%s1 + $0x5f8] sm:$0xff]
  %v239 = vld [vmem:[%s1 + $0x600] sm:$0xff]
  %v240 = vld [vmem:[%s1 + $0x608] sm:$0xff]
  %v241 = vld [vmem:[%s1 + $0x610] sm:$0xff]
  %v242 = vld [vmem:[%s1 + $0x618] sm:$0xff]
  %v243 = vld [vmem:[%s1 + $0x620] sm:$0xff]
  %v244 = vld [vmem:[%s1 + $0x628] sm:$0xff]
  %v245 = vld [vmem:[%s1 + $0x630] sm:$0xff]
  %v246 = vld [vmem:[%s1 + $0x638] sm:$0xff]
  %v247 = vld [vmem:[%s1 + $0x640] sm:$0xff]
  %v248 = vld [vmem:[%s1 + $0x648] sm:$0xff]
  %v249 = vld [vmem:[%s1 + $0x650] sm:$0xf]
  %v250 = vld [vmem:[%s1 + $0x654] sm:$0xff]
  %v251 = vld [vmem:[%s1 + $0x65c] sm:$0xff]
  %v252 = vld [vmem:[%s1 + $0x664] sm:$0xff]
  %v253 = vld [vmem:[%s1 + $0x66c] sm:$0xff]
  %v254 = vld [vmem:[%s1 + $0x674] sm:$0xff]
  %v255 = vld [vmem:[%s1 + $0x67c] sm:$0xff]
  %v256 = vld [vmem:[%s1 + $0x684] sm:$0xff]
  %v257 = vld [vmem:[%s1 + $0x68c] sm:$0xff]
  %v258 = vld [vmem:[%s1 + $0x694] sm:$0xff]
  %v259 = vld [vmem:[%s1 + $0x69c] sm:$0xff]
  %v260 = vld [vmem:[%s1 + $0x6a4] sm:$0xff]
  %v261 = vld [vmem:[%s1 + $0x6ac] sm:$0xff]
  %v262 = vld [vmem:[%s1 + $0x6b4] sm:$0xff]
  %v263 = vld [vmem:[%s1 + $0x6bc] sm:$0xf]
  %v488 = vunpack.c.l.b16 %v40
  %v489 = vunpack.c.h.b16 %v40
  %v490 = vunpack.c.l.b16 %v41
  %v491 = vunpack.c.h.b16 %v41
  %v492 = vunpack.c.l.b16 %v42
  %v493 = vunpack.c.h.b16 %v42
  %v494 = vunpack.c.l.b16 %v43
  %v495 = vunpack.c.h.b16 %v43
  %v496 = vunpack.c.l.b16 %v44
  %v497 = vunpack.c.h.b16 %v44
  %v498 = vunpack.c.l.b16 %v45
  %v499 = vunpack.c.h.b16 %v45
  %v500 = vunpack.c.l.b16 %v46
  %v501 = vunpack.c.h.b16 %v46
  %v502 = vunpack.c.l.b16 %v47
  %v503 = vunpack.c.h.b16 %v47
  %v504 = vunpack.c.l.b16 %v48
  %v505 = vunpack.c.h.b16 %v48
  %v506 = vunpack.c.l.b16 %v49
  %v507 = vunpack.c.h.b16 %v49
  %v508 = vunpack.c.l.b16 %v50
  %v509 = vunpack.c.h.b16 %v50
  %v510 = vunpack.c.l.b16 %v51
  %v511 = vunpack.c.h.b16 %v51
  %v512 = vunpack.c.l.b16 %v52
  %v513 = vunpack.c.h.b16 %v52
  %v514 = vunpack.c.l.b16 %v53
  %v515 = vunpack.c.l.b16 %v54
  %v516 = vunpack.c.h.b16 %v54
  %v517 = vunpack.c.l.b16 %v55
  %v518 = vunpack.c.h.b16 %v55
  %v519 = vunpack.c.l.b16 %v56
  %v520 = vunpack.c.h.b16 %v56
  %v521 = vunpack.c.l.b16 %v57
  %v522 = vunpack.c.h.b16 %v57
  %v523 = vunpack.c.l.b16 %v58
  %v524 = vunpack.c.h.b16 %v58
  %v525 = vunpack.c.l.b16 %v59
  %v526 = vunpack.c.h.b16 %v59
  %v527 = vunpack.c.l.b16 %v60
  %v528 = vunpack.c.h.b16 %v60
  %v529 = vunpack.c.l.b16 %v61
  %v530 = vunpack.c.h.b16 %v61
  %v531 = vunpack.c.l.b16 %v62
  %v532 = vunpack.c.h.b16 %v62
  %v533 = vunpack.c.l.b16 %v63
  %v534 = vunpack.c.h.b16 %v63
  %v535 = vunpack.c.l.b16 %v64
  %v536 = vunpack.c.h.b16 %v64
  %v537 = vunpack.c.l.b16 %v65
  %v538 = vunpack.c.h.b16 %v65
  %v539 = vunpack.c.l.b16 %v66
  %v540 = vunpack.c.h.b16 %v66
  %v541 = vunpack.c.l.b16 %v67
  %v542 = vunpack.c.l.b16 %v68
  %v543 = vunpack.c.h.b16 %v68
  %v544 = vunpack.c.l.b16 %v69
  %v545 = vunpack.c.h.b16 %v69
  %v546 = vunpack.c.l.b16 %v70
  %v547 = vunpack.c.h.b16 %v70
  %v548 = vunpack.c.l.b16 %v71
  %v549 = vunpack.c.h.b16 %v71
  %v550 = vunpack.c.l.b16 %v72
  %v551 = vunpack.c.h.b16 %v72
  %v552 = vunpack.c.l.b16 %v73
  %v553 = vunpack.c.h.b16 %v73
  %v554 = vunpack.c.l.b16 %v74
  %v555 = vunpack.c.h.b16 %v74
  %v556 = vunpack.c.l.b16 %v75
  %v557 = vunpack.c.h.b16 %v75
  %v558 = vunpack.c.l.b16 %v76
  %v559 = vunpack.c.h.b16 %v76
  %v560 = vunpack.c.l.b16 %v77
  %v561 = vunpack.c.h.b16 %v77
  %v562 = vunpack.c.l.b16 %v78
  %v563 = vunpack.c.h.b16 %v78
  %v564 = vunpack.c.l.b16 %v79
  %v565 = vunpack.c.h.b16 %v79
  %v566 = vunpack.c.l.b16 %v80
  %v567 = vunpack.c.h.b16 %v80
  %v568 = vunpack.c.l.b16 %v81
  %v569 = vunpack.c.l.b16 %v82
  %v570 = vunpack.c.h.b16 %v82
  %v571 = vunpack.c.l.b16 %v83
  %v572 = vunpack.c.h.b16 %v83
  %v573 = vunpack.c.l.b16 %v84
  %v574 = vunpack.c.h.b16 %v84
  %v575 = vunpack.c.l.b16 %v85
  %v576 = vunpack.c.h.b16 %v85
  %v577 = vunpack.c.l.b16 %v86
  %v578 = vunpack.c.h.b16 %v86
  %v579 = vunpack.c.l.b16 %v87
  %v580 = vunpack.c.h.b16 %v87
  %v581 = vunpack.c.l.b16 %v88
  %v582 = vunpack.c.h.b16 %v88
  %v583 = vunpack.c.l.b16 %v89
  %v584 = vunpack.c.h.b16 %v89
  %v585 = vunpack.c.l.b16 %v90
  %v586 = vunpack.c.h.b16 %v90
  %v587 = vunpack.c.l.b16 %v91
  %v588 = vunpack.c.h.b16 %v91
  %v589 = vunpack.c.l.b16 %v92
  %v590 = vunpack.c.h.b16 %v92
  %v591 = vunpack.c.l.b16 %v93
  %v592 = vunpack.c.h.b16 %v93
  %v593 = vunpack.c.l.b16 %v94
  %v594 = vunpack.c.h.b16 %v94
  %v595 = vunpack.c.l.b16 %v95
  %v596 = vunpack.c.l.b16 %v96
  %v597 = vunpack.c.h.b16 %v96
  %v598 = vunpack.c.l.b16 %v97
  %v599 = vunpack.c.h.b16 %v97
  %v600 = vunpack.c.l.b16 %v98
  %v601 = vunpack.c.h.b16 %v98
  %v602 = vunpack.c.l.b16 %v99
  %v603 = vunpack.c.h.b16 %v99
  %v604 = vunpack.c.l.b16 %v100
  %v605 = vunpack.c.h.b16 %v100
  %v606 = vunpack.c.l.b16 %v101
  %v607 = vunpack.c.h.b16 %v101
  %v608 = vunpack.c.l.b16 %v102
  %v609 = vunpack.c.h.b16 %v102
  %v610 = vunpack.c.l.b16 %v103
  %v611 = vunpack.c.h.b16 %v103
  %v612 = vunpack.c.l.b16 %v104
  %v613 = vunpack.c.h.b16 %v104
  %v614 = vunpack.c.l.b16 %v105
  %v615 = vunpack.c.h.b16 %v105
  %v616 = vunpack.c.l.b16 %v106
  %v617 = vunpack.c.h.b16 %v106
  %v618 = vunpack.c.l.b16 %v107
  %v619 = vunpack.c.h.b16 %v107
  %v620 = vunpack.c.l.b16 %v108
  %v621 = vunpack.c.h.b16 %v108
  %v622 = vunpack.c.l.b16 %v109
  %v623 = vunpack.c.l.b16 %v110
  %v624 = vunpack.c.h.b16 %v110
  %v625 = vunpack.c.l.b16 %v111
  %v626 = vunpack.c.h.b16 %v111
  %v627 = vunpack.c.l.b16 %v112
  %v628 = vunpack.c.h.b16 %v112
  %v629 = vunpack.c.l.b16 %v113
  %v630 = vunpack.c.h.b16 %v113
  %v631 = vunpack.c.l.b16 %v114
  %v632 = vunpack.c.h.b16 %v114
  %v633 = vunpack.c.l.b16 %v115
  %v634 = vunpack.c.h.b16 %v115
  %v635 = vunpack.c.l.b16 %v116
  %v636 = vunpack.c.h.b16 %v116
  %v637 = vunpack.c.l.b16 %v117
  %v638 = vunpack.c.h.b16 %v117
  %v639 = vunpack.c.l.b16 %v118
  %v640 = vunpack.c.h.b16 %v118
  %v641 = vunpack.c.l.b16 %v119
  %v642 = vunpack.c.h.b16 %v119
  %v643 = vunpack.c.l.b16 %v120
  %v644 = vunpack.c.h.b16 %v120
  %v645 = vunpack.c.l.b16 %v121
  %v646 = vunpack.c.h.b16 %v121
  %v647 = vunpack.c.l.b16 %v122
  %v648 = vunpack.c.h.b16 %v122
  %v649 = vunpack.c.l.b16 %v123
  %v650 = vunpack.c.l.b16 %v124
  %v651 = vunpack.c.h.b16 %v124
  %v652 = vunpack.c.l.b16 %v125
  %v653 = vunpack.c.h.b16 %v125
  %v654 = vunpack.c.l.b16 %v126
  %v655 = vunpack.c.h.b16 %v126
  %v656 = vunpack.c.l.b16 %v127
  %v657 = vunpack.c.h.b16 %v127
  %v658 = vunpack.c.l.b16 %v128
  %v659 = vunpack.c.h.b16 %v128
  %v660 = vunpack.c.l.b16 %v129
  %v661 = vunpack.c.h.b16 %v129
  %v662 = vunpack.c.l.b16 %v130
  %v663 = vunpack.c.h.b16 %v130
  %v664 = vunpack.c.l.b16 %v131
  %v665 = vunpack.c.h.b16 %v131
  %v666 = vunpack.c.l.b16 %v132
  %v667 = vunpack.c.h.b16 %v132
  %v668 = vunpack.c.l.b16 %v133
  %v669 = vunpack.c.h.b16 %v133
  %v670 = vunpack.c.l.b16 %v134
  %v671 = vunpack.c.h.b16 %v134
  %v672 = vunpack.c.l.b16 %v135
  %v673 = vunpack.c.h.b16 %v135
  %v674 = vunpack.c.l.b16 %v136
  %v675 = vunpack.c.h.b16 %v136
  %v676 = vunpack.c.l.b16 %v137
  %v677 = vunpack.c.l.b16 %v138
  %v678 = vunpack.c.h.b16 %v138
  %v679 = vunpack.c.l.b16 %v139
  %v680 = vunpack.c.h.b16 %v139
  %v681 = vunpack.c.l.b16 %v140
  %v682 = vunpack.c.h.b16 %v140
  %v683 = vunpack.c.l.b16 %v141
  %v684 = vunpack.c.h.b16 %v141
  %v685 = vunpack.c.l.b16 %v142
  %v686 = vunpack.c.h.b16 %v142
  %v687 = vunpack.c.l.b16 %v143
  %v688 = vunpack.c.h.b16 %v143
  %v689 = vunpack.c.l.b16 %v144
  %v690 = vunpack.c.h.b16 %v144
  %v691 = vunpack.c.l.b16 %v145
  %v692 = vunpack.c.h.b16 %v145
  %v693 = vunpack.c.l.b16 %v146
  %v694 = vunpack.c.h.b16 %v146
  %v695 = vunpack.c.l.b16 %v147
  %v696 = vunpack.c.h.b16 %v147
  %v697 = vunpack.c.l.b16 %v148
  %v698 = vunpack.c.h.b16 %v148
  %v699 = vunpack.c.l.b16 %v149
  %v700 = vunpack.c.h.b16 %v149
  %v701 = vunpack.c.l.b16 %v150
  %v702 = vunpack.c.h.b16 %v150
  %v703 = vunpack.c.l.b16 %v151
  %v704 = vunpack.c.l.b16 %v152
  %v705 = vunpack.c.h.b16 %v152
  %v706 = vunpack.c.l.b16 %v153
  %v707 = vunpack.c.h.b16 %v153
  %v708 = vunpack.c.l.b16 %v154
  %v709 = vunpack.c.h.b16 %v154
  %v710 = vunpack.c.l.b16 %v155
  %v711 = vunpack.c.h.b16 %v155
  %v712 = vunpack.c.l.b16 %v156
  %v713 = vunpack.c.h.b16 %v156
  %v714 = vunpack.c.l.b16 %v157
  %v715 = vunpack.c.h.b16 %v157
  %v716 = vunpack.c.l.b16 %v158
  %v717 = vunpack.c.h.b16 %v158
  %v718 = vunpack.c.l.b16 %v159
  %v719 = vunpack.c.h.b16 %v159
  %v720 = vunpack.c.l.b16 %v160
  %v721 = vunpack.c.h.b16 %v160
  %v722 = vunpack.c.l.b16 %v161
  %v723 = vunpack.c.h.b16 %v161
  %v724 = vunpack.c.l.b16 %v162
  %v725 = vunpack.c.h.b16 %v162
  %v726 = vunpack.c.l.b16 %v163
  %v727 = vunpack.c.h.b16 %v163
  %v728 = vunpack.c.l.b16 %v164
  %v729 = vunpack.c.h.b16 %v164
  %v730 = vunpack.c.l.b16 %v165
  %v731 = vunpack.c.l.b16 %v166
  %v732 = vunpack.c.h.b16 %v166
  %v733 = vunpack.c.l.b16 %v167
  %v734 = vunpack.c.h.b16 %v167
  %v735 = vunpack.c.l.b16 %v168
  %v736 = vunpack.c.h.b16 %v168
  %v737 = vunpack.c.l.b16 %v169
  %v738 = vunpack.c.h.b16 %v169
  %v739 = vunpack.c.l.b16 %v170
  %v740 = vunpack.c.h.b16 %v170
  %v741 = vunpack.c.l.b16 %v171
  %v742 = vunpack.c.h.b16 %v171
  %v743 = vunpack.c.l.b16 %v172
  %v744 = vunpack.c.h.b16 %v172
  %v745 = vunpack.c.l.b16 %v173
  %v746 = vunpack.c.h.b16 %v173
  %v747 = vunpack.c.l.b16 %v174
  %v748 = vunpack.c.h.b16 %v174
  %v749 = vunpack.c.l.b16 %v175
  %v750 = vunpack.c.h.b16 %v175
  %v751 = vunpack.c.l.b16 %v176
  %v752 = vunpack.c.h.b16 %v176
  %v753 = vunpack.c.l.b16 %v177
  %v754 = vunpack.c.h.b16 %v177
  %v755 = vunpack.c.l.b16 %v178
  %v756 = vunpack.c.h.b16 %v178
  %v757 = vunpack.c.l.b16 %v179
  %v758 = vunpack.c.l.b16 %v180
  %v759 = vunpack.c.h.b16 %v180
  %v760 = vunpack.c.l.b16 %v181
  %v761 = vunpack.c.h.b16 %v181
  %v762 = vunpack.c.l.b16 %v182
  %v763 = vunpack.c.h.b16 %v182
  %v764 = vunpack.c.l.b16 %v183
  %v765 = vunpack.c.h.b16 %v183
  %v766 = vunpack.c.l.b16 %v184
  %v767 = vunpack.c.h.b16 %v184
  %v768 = vunpack.c.l.b16 %v185
  %v769 = vunpack.c.h.b16 %v185
  %v770 = vunpack.c.l.b16 %v186
  %v771 = vunpack.c.h.b16 %v186
  %v772 = vunpack.c.l.b16 %v187
  %v773 = vunpack.c.h.b16 %v187
  %v774 = vunpack.c.l.b16 %v188
  %v775 = vunpack.c.h.b16 %v188
  %v776 = vunpack.c.l.b16 %v189
  %v777 = vunpack.c.h.b16 %v189
  %v778 = vunpack.c.l.b16 %v190
  %v779 = vunpack.c.h.b16 %v190
  %v780 = vunpack.c.l.b16 %v191
  %v781 = vunpack.c.h.b16 %v191
  %v782 = vunpack.c.l.b16 %v192
  %v783 = vunpack.c.h.b16 %v192
  %v784 = vunpack.c.l.b16 %v193
  %v785 = vunpack.c.l.b16 %v194
  %v786 = vunpack.c.h.b16 %v194
  %v787 = vunpack.c.l.b16 %v195
  %v788 = vunpack.c.h.b16 %v195
  %v789 = vunpack.c.l.b16 %v196
  %v790 = vunpack.c.h.b16 %v196
  %v791 = vunpack.c.l.b16 %v197
  %v792 = vunpack.c.h.b16 %v197
  %v793 = vunpack.c.l.b16 %v198
  %v794 = vunpack.c.h.b16 %v198
  %v795 = vunpack.c.l.b16 %v199
  %v796 = vunpack.c.h.b16 %v199
  %v797 = vunpack.c.l.b16 %v200
  %v798 = vunpack.c.h.b16 %v200
  %v799 = vunpack.c.l.b16 %v201
  %v800 = vunpack.c.h.b16 %v201
  %v801 = vunpack.c.l.b16 %v202
  %v802 = vunpack.c.h.b16 %v202
  %v803 = vunpack.c.l.b16 %v203
  %v804 = vunpack.c.h.b16 %v203
  %v805 = vunpack.c.l.b16 %v204
  %v806 = vunpack.c.h.b16 %v204
  %v807 = vunpack.c.l.b16 %v205
  %v808 = vunpack.c.h.b16 %v205
  %v809 = vunpack.c.l.b16 %v206
  %v810 = vunpack.c.h.b16 %v206
  %v811 = vunpack.c.l.b16 %v207
  %v812 = vunpack.c.l.b16 %v208
  %v813 = vunpack.c.h.b16 %v208
  %v814 = vunpack.c.l.b16 %v209
  %v815 = vunpack.c.h.b16 %v209
  %v816 = vunpack.c.l.b16 %v210
  %v817 = vunpack.c.h.b16 %v210
  %v818 = vunpack.c.l.b16 %v211
  %v819 = vunpack.c.h.b16 %v211
  %v820 = vunpack.c.l.b16 %v212
  %v821 = vunpack.c.h.b16 %v212
  %v822 = vunpack.c.l.b16 %v213
  %v823 = vunpack.c.h.b16 %v213
  %v824 = vunpack.c.l.b16 %v214
  %v825 = vunpack.c.h.b16 %v214
  %v826 = vunpack.c.l.b16 %v215
  %v827 = vunpack.c.h.b16 %v215
  %v828 = vunpack.c.l.b16 %v216
  %v829 = vunpack.c.h.b16 %v216
  %v830 = vunpack.c.l.b16 %v217
  %v831 = vunpack.c.h.b16 %v217
  %v832 = vunpack.c.l.b16 %v218
  %v833 = vunpack.c.h.b16 %v218
  %v834 = vunpack.c.l.b16 %v219
  %v835 = vunpack.c.h.b16 %v219
  %v836 = vunpack.c.l.b16 %v220
  %v837 = vunpack.c.h.b16 %v220
  %v838 = vunpack.c.l.b16 %v221
  %v839 = vunpack.c.l.b16 %v222
  %v840 = vunpack.c.h.b16 %v222
  %v841 = vunpack.c.l.b16 %v223
  %v842 = vunpack.c.h.b16 %v223
  %v843 = vunpack.c.l.b16 %v224
  %v844 = vunpack.c.h.b16 %v224
  %v845 = vunpack.c.l.b16 %v225
  %v846 = vunpack.c.h.b16 %v225
  %v847 = vunpack.c.l.b16 %v226
  %v848 = vunpack.c.h.b16 %v226
  %v849 = vunpack.c.l.b16 %v227
  %v850 = vunpack.c.h.b16 %v227
  %v851 = vunpack.c.l.b16 %v228
  %v852 = vunpack.c.h.b16 %v228
  %v853 = vunpack.c.l.b16 %v229
  %v854 = vunpack.c.h.b16 %v229
  %v855 = vunpack.c.l.b16 %v230
  %v856 = vunpack.c.h.b16 %v230
  %v857 = vunpack.c.l.b16 %v231
  %v858 = vunpack.c.h.b16 %v231
  %v859 = vunpack.c.l.b16 %v232
  %v860 = vunpack.c.h.b16 %v232
  %v861 = vunpack.c.l.b16 %v233
  %v862 = vunpack.c.h.b16 %v233
  %v863 = vunpack.c.l.b16 %v234
  %v864 = vunpack.c.h.b16 %v234
  %v865 = vunpack.c.l.b16 %v235
  %v866 = vunpack.c.l.b16 %v236
  %v867 = vunpack.c.h.b16 %v236
  %v868 = vunpack.c.l.b16 %v237
  %v869 = vunpack.c.h.b16 %v237
  %v870 = vunpack.c.l.b16 %v238
  %v871 = vunpack.c.h.b16 %v238
  %v872 = vunpack.c.l.b16 %v239
  %v873 = vunpack.c.h.b16 %v239
  %v874 = vunpack.c.l.b16 %v240
  %v875 = vunpack.c.h.b16 %v240
  %v876 = vunpack.c.l.b16 %v241
  %v877 = vunpack.c.h.b16 %v241
  %v878 = vunpack.c.l.b16 %v242
  %v879 = vunpack.c.h.b16 %v242
  %v880 = vunpack.c.l.b16 %v243
  %v881 = vunpack.c.h.b16 %v243
  %v882 = vunpack.c.l.b16 %v244
  %v883 = vunpack.c.h.b16 %v244
  %v884 = vunpack.c.l.b16 %v245
  %v885 = vunpack.c.h.b16 %v245
  %v886 = vunpack.c.l.b16 %v246
  %v887 = vunpack.c.h.b16 %v246
  %v888 = vunpack.c.l.b16 %v247
  %v889 = vunpack.c.h.b16 %v247
  %v890 = vunpack.c.l.b16 %v248
  %v891 = vunpack.c.h.b16 %v248
  %v892 = vunpack.c.l.b16 %v249
  %v893 = vunpack.c.l.b16 %v250
  %v894 = vunpack.c.h.b16 %v250
  %v895 = vunpack.c.l.b16 %v251
  %v896 = vunpack.c.h.b16 %v251
  %v897 = vunpack.c.l.b16 %v252
  %v898 = vunpack.c.h.b16 %v252
  %v899 = vunpack.c.l.b16 %v253
  %v900 = vunpack.c.h.b16 %v253
  %v901 = vunpack.c.l.b16 %v254
  %v902 = vunpack.c.h.b16 %v254
  %v903 = vunpack.c.l.b16 %v255
  %v904 = vunpack.c.h.b16 %v255
  %v905 = vunpack.c.l.b16 %v256
  %v906 = vunpack.c.h.b16 %v256
  %v907 = vunpack.c.l.b16 %v257
  %v908 = vunpack.c.h.b16 %v257
  %v909 = vunpack.c.l.b16 %v258
  %v910 = vunpack.c.h.b16 %v258
  %v911 = vunpack.c.l.b16 %v259
  %v912 = vunpack.c.h.b16 %v259
  %v913 = vunpack.c.l.b16 %v260
  %v914 = vunpack.c.h.b16 %v260
  %v915 = vunpack.c.l.b16 %v261
  %v916 = vunpack.c.h.b16 %v261
  %v917 = vunpack.c.l.b16 %v262
  %v918 = vunpack.c.h.b16 %v262
  %v919 = vunpack.c.l.b16 %v263
  %v920 = vpack.c.b16 %v515, %v488
  %v921 = vpack.c.b16 %v516, %v489
  %v922 = vpack.c.b16 %v517, %v490
  %v923 = vpack.c.b16 %v518, %v491
  %v924 = vpack.c.b16 %v519, %v492
  %v925 = vpack.c.b16 %v520, %v493
  %v926 = vpack.c.b16 %v521, %v494
  %v927 = vpack.c.b16 %v522, %v495
  %v928 = vpack.c.b16 %v523, %v496
  %v929 = vpack.c.b16 %v524, %v497
  %v930 = vpack.c.b16 %v525, %v498
  %v931 = vpack.c.b16 %v526, %v499
  %v932 = vpack.c.b16 %v527, %v500
  %v933 = vpack.c.b16 %v528, %v501
  %v934 = vpack.c.b16 %v529, %v502
  %v935 = vpack.c.b16 %v530, %v503
  %v936 = vpack.c.b16 %v531, %v504
  %v937 = vpack.c.b16 %v532, %v505
  %v938 = vpack.c.b16 %v533, %v506
  %v939 = vpack.c.b16 %v534, %v507
  %v940 = vpack.c.b16 %v535, %v508
  %v941 = vpack.c.b16 %v536, %v509
  %v942 = vpack.c.b16 %v537, %v510
  %v943 = vpack.c.b16 %v538, %v511
  %v944 = vpack.c.b16 %v539, %v512
  %v945 = vpack.c.b16 %v540, %v513
  %v946 = vpack.c.b16 %v541, %v514
  %v947 = vpack.c.b16 %v569, %v542
  %v948 = vpack.c.b16 %v570, %v543
  %v949 = vpack.c.b16 %v571, %v544
  %v950 = vpack.c.b16 %v572, %v545
  %v951 = vpack.c.b16 %v573, %v546
  %v952 = vpack.c.b16 %v574, %v547
  %v953 = vpack.c.b16 %v575, %v548
  %v954 = vpack.c.b16 %v576, %v549
  %v955 = vpack.c.b16 %v577, %v550
  %v956 = vpack.c.b16 %v578, %v551
  %v957 = vpack.c.b16 %v579, %v552
  %v958 = vpack.c.b16 %v580, %v553
  %v959 = vpack.c.b16 %v581, %v554
  %v960 = vpack.c.b16 %v582, %v555
  %v961 = vpack.c.b16 %v583, %v556
  %v962 = vpack.c.b16 %v584, %v557
  %v963 = vpack.c.b16 %v585, %v558
  %v964 = vpack.c.b16 %v586, %v559
  %v965 = vpack.c.b16 %v587, %v560
  %v966 = vpack.c.b16 %v588, %v561
  %v967 = vpack.c.b16 %v589, %v562
  %v968 = vpack.c.b16 %v590, %v563
  %v969 = vpack.c.b16 %v591, %v564
  %v970 = vpack.c.b16 %v592, %v565
  %v971 = vpack.c.b16 %v593, %v566
  %v972 = vpack.c.b16 %v594, %v567
  %v973 = vpack.c.b16 %v595, %v568
  %v974 = vpack.c.b16 %v623, %v596
  %v975 = vpack.c.b16 %v624, %v597
  %v976 = vpack.c.b16 %v625, %v598
  %v977 = vpack.c.b16 %v626, %v599
  %v978 = vpack.c.b16 %v627, %v600
  %v979 = vpack.c.b16 %v628, %v601
  %v980 = vpack.c.b16 %v629, %v602
  %v981 = vpack.c.b16 %v630, %v603
  %v982 = vpack.c.b16 %v631, %v604
  %v983 = vpack.c.b16 %v632, %v605
  %v984 = vpack.c.b16 %v633, %v606
  %v985 = vpack.c.b16 %v634, %v607
  %v986 = vpack.c.b16 %v635, %v608
  %v987 = vpack.c.b16 %v636, %v609
  %v988 = vpack.c.b16 %v637, %v610
  %v989 = vpack.c.b16 %v638, %v611
  %v990 = vpack.c.b16 %v639, %v612
  %v991 = vpack.c.b16 %v640, %v613
  %v992 = vpack.c.b16 %v641, %v614
  %v993 = vpack.c.b16 %v642, %v615
  %v994 = vpack.c.b16 %v643, %v616
  %v995 = vpack.c.b16 %v644, %v617
  %v996 = vpack.c.b16 %v645, %v618
  %v997 = vpack.c.b16 %v646, %v619
  %v998 = vpack.c.b16 %v647, %v620
  %v999 = vpack.c.b16 %v648, %v621
  %v1000 = vpack.c.b16 %v649, %v622
  %v1001 = vpack.c.b16 %v677, %v650
  %v1002 = vpack.c.b16 %v678, %v651
  %v1003 = vpack.c.b16 %v679, %v652
  %v1004 = vpack.c.b16 %v680, %v653
  %v1005 = vpack.c.b16 %v681, %v654
  %v1006 = vpack.c.b16 %v682, %v655
  %v1007 = vpack.c.b16 %v683, %v656
  %v1008 = vpack.c.b16 %v684, %v657
  %v1009 = vpack.c.b16 %v685, %v658
  %v1010 = vpack.c.b16 %v686, %v659
  %v1011 = vpack.c.b16 %v687, %v660
  %v1012 = vpack.c.b16 %v688, %v661
  %v1013 = vpack.c.b16 %v689, %v662
  %v1014 = vpack.c.b16 %v690, %v663
  %v1015 = vpack.c.b16 %v691, %v664
  %v1016 = vpack.c.b16 %v692, %v665
  %v1017 = vpack.c.b16 %v693, %v666
  %v1018 = vpack.c.b16 %v694, %v667
  %v1019 = vpack.c.b16 %v695, %v668
  %v1020 = vpack.c.b16 %v696, %v669
  %v1021 = vpack.c.b16 %v697, %v670
  %v1022 = vpack.c.b16 %v698, %v671
  %v1023 = vpack.c.b16 %v699, %v672
  %v1024 = vpack.c.b16 %v700, %v673
  %v1025 = vpack.c.b16 %v701, %v674
  %v1026 = vpack.c.b16 %v702, %v675
  %v1027 = vpack.c.b16 %v703, %v676
  %v1028 = vpack.c.b16 %v731, %v704
  %v1029 = vpack.c.b16 %v732, %v705
  %v1030 = vpack.c.b16 %v733, %v706
  %v1031 = vpack.c.b16 %v734, %v707
  %v1032 = vpack.c.b16 %v735, %v708
  %v1033 = vpack.c.b16 %v736, %v709
  %v1034 = vpack.c.b16 %v737, %v710
  %v1035 = vpack.c.b16 %v738, %v711
  %v1036 = vpack.c.b16 %v739, %v712
  %v1037 = vpack.c.b16 %v740, %v713
  %v1038 = vpack.c.b16 %v741, %v714
  %v1039 = vpack.c.b16 %v742, %v715
  %v1040 = vpack.c.b16 %v743, %v716
  %v1041 = vpack.c.b16 %v744, %v717
  %v1042 = vpack.c.b16 %v745, %v718
  %v1043 = vpack.c.b16 %v746, %v719
  %v1044 = vpack.c.b16 %v747, %v720
  %v1045 = vpack.c.b16 %v748, %v721
  %v1046 = vpack.c.b16 %v749, %v722
  %v1047 = vpack.c.b16 %v750, %v723
  %v1048 = vpack.c.b16 %v751, %v724
  %v1049 = vpack.c.b16 %v752, %v725
  %v1050 = vpack.c.b16 %v753, %v726
  %v1051 = vpack.c.b16 %v754, %v727
  %v1052 = vpack.c.b16 %v755, %v728
  %v1053 = vpack.c.b16 %v756, %v729
  %v1054 = vpack.c.b16 %v757, %v730
  %v1055 = vpack.c.b16 %v785, %v758
  %v1056 = vpack.c.b16 %v786, %v759
  %v1057 = vpack.c.b16 %v787, %v760
  %v1058 = vpack.c.b16 %v788, %v761
  %v1059 = vpack.c.b16 %v789, %v762
  %v1060 = vpack.c.b16 %v790, %v763
  %v1061 = vpack.c.b16 %v791, %v764
  %v1062 = vpack.c.b16 %v792, %v765
  %v1063 = vpack.c.b16 %v793, %v766
  %v1064 = vpack.c.b16 %v794, %v767
  %v1065 = vpack.c.b16 %v795, %v768
  %v1066 = vpack.c.b16 %v796, %v769
  %v1067 = vpack.c.b16 %v797, %v770
  %v1068 = vpack.c.b16 %v798, %v771
  %v1069 = vpack.c.b16 %v799, %v772
  %v1070 = vpack.c.b16 %v800, %v773
  %v1071 = vpack.c.b16 %v801, %v774
  %v1072 = vpack.c.b16 %v802, %v775
  %v1073 = vpack.c.b16 %v803, %v776
  %v1074 = vpack.c.b16 %v804, %v777
  %v1075 = vpack.c.b16 %v805, %v778
  %v1076 = vpack.c.b16 %v806, %v779
  %v1077 = vpack.c.b16 %v807, %v780
  %v1078 = vpack.c.b16 %v808, %v781
  %v1079 = vpack.c.b16 %v809, %v782
  %v1080 = vpack.c.b16 %v810, %v783
  %v1081 = vpack.c.b16 %v811, %v784
  %v1082 = vpack.c.b16 %v839, %v812
  %v1083 = vpack.c.b16 %v840, %v813
  %v1084 = vpack.c.b16 %v841, %v814
  %v1085 = vpack.c.b16 %v842, %v815
  %v1086 = vpack.c.b16 %v843, %v816
  %v1087 = vpack.c.b16 %v844, %v817
  %v1088 = vpack.c.b16 %v845, %v818
  %v1089 = vpack.c.b16 %v846, %v819
  %v1090 = vpack.c.b16 %v847, %v820
  %v1091 = vpack.c.b16 %v848, %v821
  %v1092 = vpack.c.b16 %v849, %v822
  %v1093 = vpack.c.b16 %v850, %v823
  %v1094 = vpack.c.b16 %v851, %v824
  %v1095 = vpack.c.b16 %v852, %v825
  %v1096 = vpack.c.b16 %v853, %v826
  %v1097 = vpack.c.b16 %v854, %v827
  %v1098 = vpack.c.b16 %v855, %v828
  %v1099 = vpack.c.b16 %v856, %v829
  %v1100 = vpack.c.b16 %v857, %v830
  %v1101 = vpack.c.b16 %v858, %v831
  %v1102 = vpack.c.b16 %v859, %v832
  %v1103 = vpack.c.b16 %v860, %v833
  %v1104 = vpack.c.b16 %v861, %v834
  %v1105 = vpack.c.b16 %v862, %v835
  %v1106 = vpack.c.b16 %v863, %v836
  %v1107 = vpack.c.b16 %v864, %v837
  %v1108 = vpack.c.b16 %v865, %v838
  %v1109 = vpack.c.b16 %v893, %v866
  %v1110 = vpack.c.b16 %v894, %v867
  %v1111 = vpack.c.b16 %v895, %v868
  %v1112 = vpack.c.b16 %v896, %v869
  %v1113 = vpack.c.b16 %v897, %v870
  %v1114 = vpack.c.b16 %v898, %v871
  %v1115 = vpack.c.b16 %v899, %v872
  %v1116 = vpack.c.b16 %v900, %v873
  %v1117 = vpack.c.b16 %v901, %v874
  %v1118 = vpack.c.b16 %v902, %v875
  %v1119 = vpack.c.b16 %v903, %v876
  %v1120 = vpack.c.b16 %v904, %v877
  %v1121 = vpack.c.b16 %v905, %v878
  %v1122 = vpack.c.b16 %v906, %v879
  %v1123 = vpack.c.b16 %v907, %v880
  %v1124 = vpack.c.b16 %v908, %v881
  %v1125 = vpack.c.b16 %v909, %v882
  %v1126 = vpack.c.b16 %v910, %v883
  %v1127 = vpack.c.b16 %v911, %v884
  %v1128 = vpack.c.b16 %v912, %v885
  %v1129 = vpack.c.b16 %v913, %v886
  %v1130 = vpack.c.b16 %v914, %v887
  %v1131 = vpack.c.b16 %v915, %v888
  %v1132 = vpack.c.b16 %v916, %v889
  %v1133 = vpack.c.b16 %v917, %v890
  %v1134 = vpack.c.b16 %v918, %v891
  %v1135 = vpack.c.b16 %v919, %v892
  %1352 = vmatpush.bf16.msra.mxu0 %v1109
  %1353 = vmatpush.bf16.msra.mxu0 %v1082
  %1354 = vmatpush.bf16.msra.mxu0 %v1055
  %1355 = vmatpush.bf16.msra.mxu0 %v1028
  %1356 = vmatpush.bf16.msra.mxu0 %v1001
  %1357 = vmatpush.bf16.msra.mxu0 %v974
  %1358 = vmatpush.bf16.msra.mxu0 %v947
  %1359 = vmatpush.bf16.msra.mxu0 %v920
  %1360 = vmatmul.bf16.gmra.mxu0 %v39
  %v1361 = vpop.f32.mrf.mxu0
  %v1362 = vadd.f32 0.0, %v1361
  %v1363 = vpop.f32.mrf.mxu0
  %1364 = vdwg.mxu0
  %1365 = vmatpush.bf16.msra.mxu0 %v1110
  %1366 = vmatpush.bf16.msra.mxu0 %v1083
  %1367 = vmatpush.bf16.msra.mxu0 %v1056
  %1368 = vmatpush.bf16.msra.mxu0 %v1029
  %1369 = vmatpush.bf16.msra.mxu0 %v1002
  %1370 = vmatpush.bf16.msra.mxu0 %v975
  %1371 = vmatpush.bf16.msra.mxu0 %v948
  %1372 = vmatpush.bf16.msra.mxu0 %v921
  %1373 = vmatmul.bf16.gmra.mxu0 %v39
  %v1374 = vpop.f32.mrf.mxu0
  %v1375 = vadd.f32 0.0, %v1374
  %v1376 = vpop.f32.mrf.mxu0
  %1377 = vdwg.mxu0
  %1378 = vmatpush.bf16.msra.mxu0 %v1111
  %1379 = vmatpush.bf16.msra.mxu0 %v1084
  %1380 = vmatpush.bf16.msra.mxu0 %v1057
  %1381 = vmatpush.bf16.msra.mxu0 %v1030
  %1382 = vmatpush.bf16.msra.mxu0 %v1003
  %1383 = vmatpush.bf16.msra.mxu0 %v976
  %1384 = vmatpush.bf16.msra.mxu0 %v949
  %1385 = vmatpush.bf16.msra.mxu0 %v922
  %1386 = vmatmul.bf16.gmra.mxu0 %v39
  %v1387 = vpop.f32.mrf.mxu0
  %v1388 = vadd.f32 0.0, %v1387
  %v1389 = vpop.f32.mrf.mxu0
  %1390 = vdwg.mxu0
  %1391 = vmatpush.bf16.msra.mxu0 %v1112
  %1392 = vmatpush.bf16.msra.mxu0 %v1085
  %1393 = vmatpush.bf16.msra.mxu0 %v1058
  %1394 = vmatpush.bf16.msra.mxu0 %v1031
  %1395 = vmatpush.bf16.msra.mxu0 %v1004
  %1396 = vmatpush.bf16.msra.mxu0 %v977
  %1397 = vmatpush.bf16.msra.mxu0 %v950
  %1398 = vmatpush.bf16.msra.mxu0 %v923
  %1399 = vmatmul.bf16.gmra.mxu0 %v39
  %v1400 = vpop.f32.mrf.mxu0
  %v1401 = vadd.f32 0.0, %v1400
  %v1402 = vpop.f32.mrf.mxu0
  %1403 = vdwg.mxu0
  %1404 = vmatpush.bf16.msra.mxu0 %v1113
  %1405 = vmatpush.bf16.msra.mxu0 %v1086
  %1406 = vmatpush.bf16.msra.mxu0 %v1059
  %1407 = vmatpush.bf16.msra.mxu0 %v1032
  %1408 = vmatpush.bf16.msra.mxu0 %v1005
  %1409 = vmatpush.bf16.msra.mxu0 %v978
  %1410 = vmatpush.bf16.msra.mxu0 %v951
  %1411 = vmatpush.bf16.msra.mxu0 %v924
  %1412 = vmatmul.bf16.gmra.mxu0 %v39
  %v1413 = vpop.f32.mrf.mxu0
  %v1414 = vadd.f32 0.0, %v1413
  %v1415 = vpop.f32.mrf.mxu0
  %1416 = vdwg.mxu0
  %1417 = vmatpush.bf16.msra.mxu0 %v1114
  %1418 = vmatpush.bf16.msra.mxu0 %v1087
  %1419 = vmatpush.bf16.msra.mxu0 %v1060
  %1420 = vmatpush.bf16.msra.mxu0 %v1033
  %1421 = vmatpush.bf16.msra.mxu0 %v1006
  %1422 = vmatpush.bf16.msra.mxu0 %v979
  %1423 = vmatpush.bf16.msra.mxu0 %v952
  %1424 = vmatpush.bf16.msra.mxu0 %v925
  %1425 = vmatmul.bf16.gmra.mxu0 %v39
  %v1426 = vpop.f32.mrf.mxu0
  %v1427 = vadd.f32 0.0, %v1426
  %v1428 = vpop.f32.mrf.mxu0
  %1429 = vdwg.mxu0
  %1430 = vmatpush.bf16.msra.mxu0 %v1115
  %1431 = vmatpush.bf16.msra.mxu0 %v1088
  %1432 = vmatpush.bf16.msra.mxu0 %v1061
  %1433 = vmatpush.bf16.msra.mxu0 %v1034
  %1434 = vmatpush.bf16.msra.mxu0 %v1007
  %1435 = vmatpush.bf16.msra.mxu0 %v980
  %1436 = vmatpush.bf16.msra.mxu0 %v953
  %1437 = vmatpush.bf16.msra.mxu0 %v926
  %1438 = vmatmul.bf16.gmra.mxu0 %v39
  %v1439 = vpop.f32.mrf.mxu0
  %v1440 = vadd.f32 0.0, %v1439
  %v1441 = vpop.f32.mrf.mxu0
  %1442 = vdwg.mxu0
  %1443 = vmatpush.bf16.msra.mxu0 %v1116
  %1444 = vmatpush.bf16.msra.mxu0 %v1089
  %1445 = vmatpush.bf16.msra.mxu0 %v1062
  %1446 = vmatpush.bf16.msra.mxu0 %v1035
  %1447 = vmatpush.bf16.msra.mxu0 %v1008
  %1448 = vmatpush.bf16.msra.mxu0 %v981
  %1449 = vmatpush.bf16.msra.mxu0 %v954
  %1450 = vmatpush.bf16.msra.mxu0 %v927
  %1451 = vmatmul.bf16.gmra.mxu0 %v39
  %v1452 = vpop.f32.mrf.mxu0
  %v1453 = vadd.f32 0.0, %v1452
  %v1454 = vpop.f32.mrf.mxu0
  %1455 = vdwg.mxu0
  %1456 = vmatpush.bf16.msra.mxu0 %v1117
  %1457 = vmatpush.bf16.msra.mxu0 %v1090
  %1458 = vmatpush.bf16.msra.mxu0 %v1063
  %1459 = vmatpush.bf16.msra.mxu0 %v1036
  %1460 = vmatpush.bf16.msra.mxu0 %v1009
  %1461 = vmatpush.bf16.msra.mxu0 %v982
  %1462 = vmatpush.bf16.msra.mxu0 %v955
  %1463 = vmatpush.bf16.msra.mxu0 %v928
  %1464 = vmatmul.bf16.gmra.mxu0 %v39
  %v1465 = vpop.f32.mrf.mxu0
  %v1466 = vadd.f32 0.0, %v1465
  %v1467 = vpop.f32.mrf.mxu0
  %1468 = vdwg.mxu0
  %1469 = vmatpush.bf16.msra.mxu0 %v1118
  %1470 = vmatpush.bf16.msra.mxu0 %v1091
  %1471 = vmatpush.bf16.msra.mxu0 %v1064
  %1472 = vmatpush.bf16.msra.mxu0 %v1037
  %1473 = vmatpush.bf16.msra.mxu0 %v1010
  %1474 = vmatpush.bf16.msra.mxu0 %v983
  %1475 = vmatpush.bf16.msra.mxu0 %v956
  %1476 = vmatpush.bf16.msra.mxu0 %v929
  %1477 = vmatmul.bf16.gmra.mxu0 %v39
  %v1478 = vpop.f32.mrf.mxu0
  %v1479 = vadd.f32 0.0, %v1478
  %v1480 = vpop.f32.mrf.mxu0
  %1481 = vdwg.mxu0
  %1482 = vmatpush.bf16.msra.mxu0 %v1119
  %1483 = vmatpush.bf16.msra.mxu0 %v1092
  %1484 = vmatpush.bf16.msra.mxu0 %v1065
  %1485 = vmatpush.bf16.msra.mxu0 %v1038
  %1486 = vmatpush.bf16.msra.mxu0 %v1011
  %1487 = vmatpush.bf16.msra.mxu0 %v984
  %1488 = vmatpush.bf16.msra.mxu0 %v957
  %1489 = vmatpush.bf16.msra.mxu0 %v930
  %1490 = vmatmul.bf16.gmra.mxu0 %v39
  %v1491 = vpop.f32.mrf.mxu0
  %v1492 = vadd.f32 0.0, %v1491
  %v1493 = vpop.f32.mrf.mxu0
  %1494 = vdwg.mxu0
  %1495 = vmatpush.bf16.msra.mxu0 %v1120
  %1496 = vmatpush.bf16.msra.mxu0 %v1093
  %1497 = vmatpush.bf16.msra.mxu0 %v1066
  %1498 = vmatpush.bf16.msra.mxu0 %v1039
  %1499 = vmatpush.bf16.msra.mxu0 %v1012
  %1500 = vmatpush.bf16.msra.mxu0 %v985
  %1501 = vmatpush.bf16.msra.mxu0 %v958
  %1502 = vmatpush.bf16.msra.mxu0 %v931
  %1503 = vmatmul.bf16.gmra.mxu0 %v39
  %v1504 = vpop.f32.mrf.mxu0
  %v1505 = vadd.f32 0.0, %v1504
  %v1506 = vpop.f32.mrf.mxu0
  %1507 = vdwg.mxu0
  %1508 = vmatpush.bf16.msra.mxu0 %v1121
  %1509 = vmatpush.bf16.msra.mxu0 %v1094
  %1510 = vmatpush.bf16.msra.mxu0 %v1067
  %1511 = vmatpush.bf16.msra.mxu0 %v1040
  %1512 = vmatpush.bf16.msra.mxu0 %v1013
  %1513 = vmatpush.bf16.msra.mxu0 %v986
  %1514 = vmatpush.bf16.msra.mxu0 %v959
  %1515 = vmatpush.bf16.msra.mxu0 %v932
  %1516 = vmatmul.bf16.gmra.mxu0 %v39
  %v1517 = vpop.f32.mrf.mxu0
  %v1518 = vadd.f32 0.0, %v1517
  %v1519 = vpop.f32.mrf.mxu0
  %1520 = vdwg.mxu0
  %1521 = vmatpush.bf16.msra.mxu0 %v1122
  %1522 = vmatpush.bf16.msra.mxu0 %v1095
  %1523 = vmatpush.bf16.msra.mxu0 %v1068
  %1524 = vmatpush.bf16.msra.mxu0 %v1041
  %1525 = vmatpush.bf16.msra.mxu0 %v1014
  %1526 = vmatpush.bf16.msra.mxu0 %v987
  %1527 = vmatpush.bf16.msra.mxu0 %v960
  %1528 = vmatpush.bf16.msra.mxu0 %v933
  %1529 = vmatmul.bf16.gmra.mxu0 %v39
  %v1530 = vpop.f32.mrf.mxu0
  %v1531 = vadd.f32 0.0, %v1530
  %v1532 = vpop.f32.mrf.mxu0
  %1533 = vdwg.mxu0
  %1534 = vmatpush.bf16.msra.mxu0 %v1123
  %1535 = vmatpush.bf16.msra.mxu0 %v1096
  %1536 = vmatpush.bf16.msra.mxu0 %v1069
  %1537 = vmatpush.bf16.msra.mxu0 %v1042
  %1538 = vmatpush.bf16.msra.mxu0 %v1015
  %1539 = vmatpush.bf16.msra.mxu0 %v988
  %1540 = vmatpush.bf16.msra.mxu0 %v961
  %1541 = vmatpush.bf16.msra.mxu0 %v934
  %1542 = vmatmul.bf16.gmra.mxu0 %v39
  %v1543 = vpop.f32.mrf.mxu0
  %v1544 = vadd.f32 0.0, %v1543
  %v1545 = vpop.f32.mrf.mxu0
  %1546 = vdwg.mxu0
  %1547 = vmatpush.bf16.msra.mxu0 %v1124
  %1548 = vmatpush.bf16.msra.mxu0 %v1097
  %1549 = vmatpush.bf16.msra.mxu0 %v1070
  %1550 = vmatpush.bf16.msra.mxu0 %v1043
  %1551 = vmatpush.bf16.msra.mxu0 %v1016
  %1552 = vmatpush.bf16.msra.mxu0 %v989
  %1553 = vmatpush.bf16.msra.mxu0 %v962
  %1554 = vmatpush.bf16.msra.mxu0 %v935
  %1555 = vmatmul.bf16.gmra.mxu0 %v39
  %v1556 = vpop.f32.mrf.mxu0
  %v1557 = vadd.f32 0.0, %v1556
  %v1558 = vpop.f32.mrf.mxu0
  %1559 = vdwg.mxu0
  %1560 = vmatpush.bf16.msra.mxu0 %v1125
  %1561 = vmatpush.bf16.msra.mxu0 %v1098
  %1562 = vmatpush.bf16.msra.mxu0 %v1071
  %1563 = vmatpush.bf16.msra.mxu0 %v1044
  %1564 = vmatpush.bf16.msra.mxu0 %v1017
  %1565 = vmatpush.bf16.msra.mxu0 %v990
  %1566 = vmatpush.bf16.msra.mxu0 %v963
  %1567 = vmatpush.bf16.msra.mxu0 %v936
  %1568 = vmatmul.bf16.gmra.mxu0 %v39
  %v1569 = vpop.f32.mrf.mxu0
  %v1570 = vadd.f32 0.0, %v1569
  %v1571 = vpop.f32.mrf.mxu0
  %1572 = vdwg.mxu0
  %1573 = vmatpush.bf16.msra.mxu0 %v1126
  %1574 = vmatpush.bf16.msra.mxu0 %v1099
  %1575 = vmatpush.bf16.msra.mxu0 %v1072
  %1576 = vmatpush.bf16.msra.mxu0 %v1045
  %1577 = vmatpush.bf16.msra.mxu0 %v1018
  %1578 = vmatpush.bf16.msra.mxu0 %v991
  %1579 = vmatpush.bf16.msra.mxu0 %v964
  %1580 = vmatpush.bf16.msra.mxu0 %v937
  %1581 = vmatmul.bf16.gmra.mxu0 %v39
  %v1582 = vpop.f32.mrf.mxu0
  %v1583 = vadd.f32 0.0, %v1582
  %v1584 = vpop.f32.mrf.mxu0
  %1585 = vdwg.mxu0
  %1586 = vmatpush.bf16.msra.mxu0 %v1127
  %1587 = vmatpush.bf16.msra.mxu0 %v1100
  %1588 = vmatpush.bf16.msra.mxu0 %v1073
  %1589 = vmatpush.bf16.msra.mxu0 %v1046
  %1590 = vmatpush.bf16.msra.mxu0 %v1019
  %1591 = vmatpush.bf16.msra.mxu0 %v992
  %1592 = vmatpush.bf16.msra.mxu0 %v965
  %1593 = vmatpush.bf16.msra.mxu0 %v938
  %1594 = vmatmul.bf16.gmra.mxu0 %v39
  %v1595 = vpop.f32.mrf.mxu0
  %v1596 = vadd.f32 0.0, %v1595
  %v1597 = vpop.f32.mrf.mxu0
  %1598 = vdwg.mxu0
  %1599 = vmatpush.bf16.msra.mxu0 %v1128
  %1600 = vmatpush.bf16.msra.mxu0 %v1101
  %1601 = vmatpush.bf16.msra.mxu0 %v1074
  %1602 = vmatpush.bf16.msra.mxu0 %v1047
  %1603 = vmatpush.bf16.msra.mxu0 %v1020
  %1604 = vmatpush.bf16.msra.mxu0 %v993
  %1605 = vmatpush.bf16.msra.mxu0 %v966
  %1606 = vmatpush.bf16.msra.mxu0 %v939
  %1607 = vmatmul.bf16.gmra.mxu0 %v39
  %v1608 = vpop.f32.mrf.mxu0
  %v1609 = vadd.f32 0.0, %v1608
  %v1610 = vpop.f32.mrf.mxu0
  %1611 = vdwg.mxu0
  %1612 = vmatpush.bf16.msra.mxu0 %v1129
  %1613 = vmatpush.bf16.msra.mxu0 %v1102
  %1614 = vmatpush.bf16.msra.mxu0 %v1075
  %1615 = vmatpush.bf16.msra.mxu0 %v1048
  %1616 = vmatpush.bf16.msra.mxu0 %v1021
  %1617 = vmatpush.bf16.msra.mxu0 %v994
  %1618 = vmatpush.bf16.msra.mxu0 %v967
  %1619 = vmatpush.bf16.msra.mxu0 %v940
  %1620 = vmatmul.bf16.gmra.mxu0 %v39
  %v1621 = vpop.f32.mrf.mxu0
  %v1622 = vadd.f32 0.0, %v1621
  %v1623 = vpop.f32.mrf.mxu0
  %1624 = vdwg.mxu0
  %1625 = vmatpush.bf16.msra.mxu0 %v1130
  %1626 = vmatpush.bf16.msra.mxu0 %v1103
  %1627 = vmatpush.bf16.msra.mxu0 %v1076
  %1628 = vmatpush.bf16.msra.mxu0 %v1049
  %1629 = vmatpush.bf16.msra.mxu0 %v1022
  %1630 = vmatpush.bf16.msra.mxu0 %v995
  %1631 = vmatpush.bf16.msra.mxu0 %v968
  %1632 = vmatpush.bf16.msra.mxu0 %v941
  %1633 = vmatmul.bf16.gmra.mxu0 %v39
  %v1634 = vpop.f32.mrf.mxu0
  %v1635 = vadd.f32 0.0, %v1634
  %v1636 = vpop.f32.mrf.mxu0
  %1637 = vdwg.mxu0
  %1638 = vmatpush.bf16.msra.mxu0 %v1131
  %1639 = vmatpush.bf16.msra.mxu0 %v1104
  %1640 = vmatpush.bf16.msra.mxu0 %v1077
  %1641 = vmatpush.bf16.msra.mxu0 %v1050
  %1642 = vmatpush.bf16.msra.mxu0 %v1023
  %1643 = vmatpush.bf16.msra.mxu0 %v996
  %1644 = vmatpush.bf16.msra.mxu0 %v969
  %1645 = vmatpush.bf16.msra.mxu0 %v942
  %1646 = vmatmul.bf16.gmra.mxu0 %v39
  %v1647 = vpop.f32.mrf.mxu0
  %v1648 = vadd.f32 0.0, %v1647
  %v1649 = vpop.f32.mrf.mxu0
  %1650 = vdwg.mxu0
  %1651 = vmatpush.bf16.msra.mxu0 %v1132
  %1652 = vmatpush.bf16.msra.mxu0 %v1105
  %1653 = vmatpush.bf16.msra.mxu0 %v1078
  %1654 = vmatpush.bf16.msra.mxu0 %v1051
  %1655 = vmatpush.bf16.msra.mxu0 %v1024
  %1656 = vmatpush.bf16.msra.mxu0 %v997
  %1657 = vmatpush.bf16.msra.mxu0 %v970
  %1658 = vmatpush.bf16.msra.mxu0 %v943
  %1659 = vmatmul.bf16.gmra.mxu0 %v39
  %v1660 = vpop.f32.mrf.mxu0
  %v1661 = vadd.f32 0.0, %v1660
  %v1662 = vpop.f32.mrf.mxu0
  %1663 = vdwg.mxu0
  %1664 = vmatpush.bf16.msra.mxu0 %v1133
  %1665 = vmatpush.bf16.msra.mxu0 %v1106
  %1666 = vmatpush.bf16.msra.mxu0 %v1079
  %1667 = vmatpush.bf16.msra.mxu0 %v1052
  %1668 = vmatpush.bf16.msra.mxu0 %v1025
  %1669 = vmatpush.bf16.msra.mxu0 %v998
  %1670 = vmatpush.bf16.msra.mxu0 %v971
  %1671 = vmatpush.bf16.msra.mxu0 %v944
  %1672 = vmatmul.bf16.gmra.mxu0 %v39
  %v1673 = vpop.f32.mrf.mxu0
  %v1674 = vadd.f32 0.0, %v1673
  %v1675 = vpop.f32.mrf.mxu0
  %1676 = vdwg.mxu0
  %1677 = vmatpush.bf16.msra.mxu0 %v1134
  %1678 = vmatpush.bf16.msra.mxu0 %v1107
  %1679 = vmatpush.bf16.msra.mxu0 %v1080
  %1680 = vmatpush.bf16.msra.mxu0 %v1053
  %1681 = vmatpush.bf16.msra.mxu0 %v1026
  %1682 = vmatpush.bf16.msra.mxu0 %v999
  %1683 = vmatpush.bf16.msra.mxu0 %v972
  %1684 = vmatpush.bf16.msra.mxu0 %v945
  %1685 = vmatmul.bf16.gmra.mxu0 %v39
  %v1686 = vpop.f32.mrf.mxu0
  %v1687 = vadd.f32 0.0, %v1686
  %v1688 = vpop.f32.mrf.mxu0
  %1689 = vdwg.mxu0
  %1690 = vmatpush.bf16.msra.mxu0 %v1135
  %1691 = vmatpush.bf16.msra.mxu0 %v1108
  %1692 = vmatpush.bf16.msra.mxu0 %v1081
  %1693 = vmatpush.bf16.msra.mxu0 %v1054
  %1694 = vmatpush.bf16.msra.mxu0 %v1027
  %1695 = vmatpush.bf16.msra.mxu0 %v1000
  %1696 = vmatpush.bf16.msra.mxu0 %v973
  %1697 = vmatpush.bf16.msra.mxu0 %v946
  %1698 = vmatmul.bf16.gmra.mxu0 %v39
  %v1699 = vpop.f32.mrf.mxu0
  %v1700 = vadd.f32 0.0, %v1699
  %v1701 = vpop.f32.mrf.mxu0
  %1702 = vdwg.mxu0
  %v1703 = vmax.f32 %v1362, %v1401
  %v1704 = vmax.f32 %v1375, %v1414
  %v1705 = vmax.f32 %v1388, %v1427
  %v1706 = vmax.f32 %v1703, %v1440
  %v1707 = vmax.f32 %v1704, %v1453
  %v1708 = vmax.f32 %v1705, %v1466
  %v1709 = vmax.f32 %v1706, %v1479
  %v1710 = vmax.f32 %v1707, %v1492
  %v1711 = vmax.f32 %v1708, %v1505
  %v1712 = vmax.f32 %v1709, %v1518
  %v1713 = vmax.f32 %v1710, %v1531
  %v1714 = vmax.f32 %v1711, %v1544
  %v1715 = vmax.f32 %v1712, %v1557
  %v1716 = vmax.f32 %v1713, %v1570
  %v1717 = vmax.f32 %v1714, %v1583
  %v1718 = vmax.f32 %v1715, %v1596
  %v1719 = vmax.f32 %v1716, %v1609
  %v1720 = vmax.f32 %v1717, %v1622
  %v1721 = vmax.f32 %v1718, %v1635
  %v1722 = vmax.f32 %v1719, %v1648
  %v1723 = vmax.f32 %v1720, %v1661
  %v1724 = vmax.f32 %v1721, %v1674
  %v1725 = vmax.f32 %v1722, %v1687
  %v1726 = vmax.f32 %v1723, %v1700
  %v1727 = vld [vmem:[%s2] sm:$0x7]
  %v1729 = vperm.slane %v1727, 0
  %v1730 = vperm.slane %v1727, 1
  %v1731 = vperm.slane %v1727, 2
  %v1735 = vadd.f32 %v1724, %v1729
  %v1736 = vadd.f32 %v1725, %v1730
  %v1737 = vadd.f32 %v1726, %v1731
  %v1738 = vmax.f32 %v1735, 0.0
  %v1739 = vmax.f32 %v1736, 0.0
  %v1740 = vmax.f32 %v1737, 0.0
  %v1741 = vpack.c.bf16 %v1738, %v1738
  %v1742 = vpack.c.bf16 %v1739, %v1739
  %v1743 = vpack.c.bf16 %v1740, %v1740
  %v1744 = vld [vmem:[%s3] sm:$0xff]
  %v1745 = vld [vmem:[%s3 + $0x8] sm:$0xff]
  %v1746 = vld [vmem:[%s3 + $0x10] sm:$0xff]
  %v1747 = vld [vmem:[%s3 + $0x18] sm:$0xff]
  %v1748 = vld [vmem:[%s3 + $0x20] sm:$0xff]
  %v1749 = vld [vmem:[%s3 + $0x28] sm:$0xff]
  %v1750 = vld [vmem:[%s3 + $0x30] sm:$0xff]
  %v1751 = vld [vmem:[%s3 + $0x38] sm:$0xff]
  %v1752 = vld [vmem:[%s3 + $0x40] sm:$0xff]
  %v1753 = vld [vmem:[%s3 + $0x48] sm:$0xff]
  %v1754 = vld [vmem:[%s3 + $0x50] sm:$0xff]
  %v1755 = vld [vmem:[%s3 + $0x58] sm:$0xff]
  %v1756 = vld [vmem:[%s3 + $0x60] sm:$0xff]
  %v1757 = vld [vmem:[%s3 + $0x68] sm:$0xff]
  %v1758 = vld [vmem:[%s3 + $0x70] sm:$0xff]
  %v1759 = vld [vmem:[%s3 + $0x78] sm:$0xff]
  %v1760 = vld [vmem:[%s3 + $0x80] sm:$0xff]
  %v1761 = vld [vmem:[%s3 + $0x88] sm:$0xff]
  %v1762 = vld [vmem:[%s3 + $0x90] sm:$0xff]
  %v1763 = vld [vmem:[%s3 + $0x98] sm:$0xff]
  %v1764 = vld [vmem:[%s3 + $0xa0] sm:$0xff]
  %v1765 = vld [vmem:[%s3 + $0xa8] sm:$0xff]
  %v1766 = vld [vmem:[%s3 + $0xb0] sm:$0xff]
  %v1767 = vld [vmem:[%s3 + $0xb8] sm:$0xff]
  %v1768 = vld [vmem:[%s3 + $0xc0] sm:$0xff]
  %v1769 = vld [vmem:[%s3 + $0xc8] sm:$0xff]
  %v1770 = vld [vmem:[%s3 + $0xd0] sm:$0xff]
  %v1771 = vld [vmem:[%s3 + $0xd8] sm:$0xff]
  %v1772 = vld [vmem:[%s3 + $0xe0] sm:$0xff]
  %v1773 = vld [vmem:[%s3 + $0xe8] sm:$0xff]
  %v1774 = vld [vmem:[%s3 + $0xf0] sm:$0xff]
  %v1775 = vld [vmem:[%s3 + $0xf8] sm:$0xff]
  %v1776 = vld [vmem:[%s3 + $0x100] sm:$0xff]
  %v1777 = vld [vmem:[%s3 + $0x108] sm:$0xff]
  %v1778 = vld [vmem:[%s3 + $0x110] sm:$0xff]
  %v1779 = vld [vmem:[%s3 + $0x118] sm:$0xff]
  %v1780 = vld [vmem:[%s3 + $0x120] sm:$0xff]
  %v1781 = vld [vmem:[%s3 + $0x128] sm:$0xff]
  %v1782 = vld [vmem:[%s3 + $0x130] sm:$0xff]
  %v1783 = vld [vmem:[%s3 + $0x138] sm:$0xff]
  %v1784 = vld [vmem:[%s3 + $0x140] sm:$0xff]
  %v1785 = vld [vmem:[%s3 + $0x148] sm:$0xff]
  %v1786 = vld [vmem:[%s3 + $0x150] sm:$0xff]
  %v1787 = vld [vmem:[%s3 + $0x158] sm:$0xff]
  %v1788 = vld [vmem:[%s3 + $0x160] sm:$0xff]
  %v1789 = vld [vmem:[%s3 + $0x168] sm:$0xff]
  %v1790 = vld [vmem:[%s3 + $0x170] sm:$0xff]
  %v1791 = vld [vmem:[%s3 + $0x178] sm:$0xff]
  %v1792 = vld [vmem:[%s4] sm:$0x3]
  %v1794 = vperm.slane %v1792, 0
  %v1795 = vperm.slane %v1792, 1
  %v1846 = vunpack.c.l.b16 %v1744
  %v1847 = vunpack.c.h.b16 %v1744
  %v1848 = vunpack.c.l.b16 %v1745
  %v1849 = vunpack.c.h.b16 %v1745
  %v1850 = vunpack.c.l.b16 %v1746
  %v1851 = vunpack.c.h.b16 %v1746
  %v1852 = vunpack.c.l.b16 %v1747
  %v1853 = vunpack.c.h.b16 %v1747
  %v1854 = vunpack.c.l.b16 %v1748
  %v1855 = vunpack.c.h.b16 %v1748
  %v1856 = vunpack.c.l.b16 %v1749
  %v1857 = vunpack.c.h.b16 %v1749
  %v1858 = vunpack.c.l.b16 %v1750
  %v1859 = vunpack.c.h.b16 %v1750
  %v1860 = vunpack.c.l.b16 %v1751
  %v1861 = vunpack.c.h.b16 %v1751
  %v1862 = vunpack.c.l.b16 %v1752
  %v1863 = vunpack.c.h.b16 %v1752
  %v1864 = vunpack.c.l.b16 %v1753
  %v1865 = vunpack.c.h.b16 %v1753
  %v1866 = vunpack.c.l.b16 %v1754
  %v1867 = vunpack.c.h.b16 %v1754
  %v1868 = vunpack.c.l.b16 %v1755
  %v1869 = vunpack.c.h.b16 %v1755
  %v1870 = vunpack.c.l.b16 %v1756
  %v1871 = vunpack.c.h.b16 %v1756
  %v1872 = vunpack.c.l.b16 %v1757
  %v1873 = vunpack.c.h.b16 %v1757
  %v1874 = vunpack.c.l.b16 %v1758
  %v1875 = vunpack.c.h.b16 %v1758
  %v1876 = vunpack.c.l.b16 %v1759
  %v1877 = vunpack.c.h.b16 %v1759
  %v1878 = vunpack.c.l.b16 %v1760
  %v1879 = vunpack.c.h.b16 %v1760
  %v1880 = vunpack.c.l.b16 %v1761
  %v1881 = vunpack.c.h.b16 %v1761
  %v1882 = vunpack.c.l.b16 %v1762
  %v1883 = vunpack.c.h.b16 %v1762
  %v1884 = vunpack.c.l.b16 %v1763
  %v1885 = vunpack.c.h.b16 %v1763
  %v1886 = vunpack.c.l.b16 %v1764
  %v1887 = vunpack.c.h.b16 %v1764
  %v1888 = vunpack.c.l.b16 %v1765
  %v1889 = vunpack.c.h.b16 %v1765
  %v1890 = vunpack.c.l.b16 %v1766
  %v1891 = vunpack.c.h.b16 %v1766
  %v1892 = vunpack.c.l.b16 %v1767
  %v1893 = vunpack.c.h.b16 %v1767
  %v1894 = vunpack.c.l.b16 %v1768
  %v1895 = vunpack.c.h.b16 %v1768
  %v1896 = vunpack.c.l.b16 %v1769
  %v1897 = vunpack.c.h.b16 %v1769
  %v1898 = vunpack.c.l.b16 %v1770
  %v1899 = vunpack.c.h.b16 %v1770
  %v1900 = vunpack.c.l.b16 %v1771
  %v1901 = vunpack.c.h.b16 %v1771
  %v1902 = vunpack.c.l.b16 %v1772
  %v1903 = vunpack.c.h.b16 %v1772
  %v1904 = vunpack.c.l.b16 %v1773
  %v1905 = vunpack.c.h.b16 %v1773
  %v1906 = vunpack.c.l.b16 %v1774
  %v1907 = vunpack.c.h.b16 %v1774
  %v1908 = vunpack.c.l.b16 %v1775
  %v1909 = vunpack.c.h.b16 %v1775
  %v1910 = vunpack.c.l.b16 %v1776
  %v1911 = vunpack.c.h.b16 %v1776
  %v1912 = vunpack.c.l.b16 %v1777
  %v1913 = vunpack.c.h.b16 %v1777
  %v1914 = vunpack.c.l.b16 %v1778
  %v1915 = vunpack.c.h.b16 %v1778
  %v1916 = vunpack.c.l.b16 %v1779
  %v1917 = vunpack.c.h.b16 %v1779
  %v1918 = vunpack.c.l.b16 %v1780
  %v1919 = vunpack.c.h.b16 %v1780
  %v1920 = vunpack.c.l.b16 %v1781
  %v1921 = vunpack.c.h.b16 %v1781
  %v1922 = vunpack.c.l.b16 %v1782
  %v1923 = vunpack.c.h.b16 %v1782
  %v1924 = vunpack.c.l.b16 %v1783
  %v1925 = vunpack.c.h.b16 %v1783
  %v1926 = vunpack.c.l.b16 %v1784
  %v1927 = vunpack.c.h.b16 %v1784
  %v1928 = vunpack.c.l.b16 %v1785
  %v1929 = vunpack.c.h.b16 %v1785
  %v1930 = vunpack.c.l.b16 %v1786
  %v1931 = vunpack.c.h.b16 %v1786
  %v1932 = vunpack.c.l.b16 %v1787
  %v1933 = vunpack.c.h.b16 %v1787
  %v1934 = vunpack.c.l.b16 %v1788
  %v1935 = vunpack.c.h.b16 %v1788
  %v1936 = vunpack.c.l.b16 %v1789
  %v1937 = vunpack.c.h.b16 %v1789
  %v1938 = vunpack.c.l.b16 %v1790
  %v1939 = vunpack.c.h.b16 %v1790
  %v1940 = vunpack.c.l.b16 %v1791
  %v1941 = vunpack.c.h.b16 %v1791
  %v1942 = vpack.c.b16 %v1848, %v1846
  %v1943 = vpack.c.b16 %v1849, %v1847
  %v1944 = vpack.c.b16 %v1852, %v1850
  %v1945 = vpack.c.b16 %v1853, %v1851
  %v1946 = vpack.c.b16 %v1856, %v1854
  %v1947 = vpack.c.b16 %v1857, %v1855
  %v1948 = vpack.c.b16 %v1860, %v1858
  %v1949 = vpack.c.b16 %v1861, %v1859
  %v1950 = vpack.c.b16 %v1864, %v1862
  %v1951 = vpack.c.b16 %v1865, %v1863
  %v1952 = vpack.c.b16 %v1868, %v1866
  %v1953 = vpack.c.b16 %v1869, %v1867
  %v1954 = vpack.c.b16 %v1872, %v1870
  %v1955 = vpack.c.b16 %v1873, %v1871
  %v1956 = vpack.c.b16 %v1876, %v1874
  %v1957 = vpack.c.b16 %v1877, %v1875
  %v1958 = vpack.c.b16 %v1880, %v1878
  %v1959 = vpack.c.b16 %v1881, %v1879
  %v1960 = vpack.c.b16 %v1884, %v1882
  %v1961 = vpack.c.b16 %v1885, %v1883
  %v1962 = vpack.c.b16 %v1888, %v1886
  %v1963 = vpack.c.b16 %v1889, %v1887
  %v1964 = vpack.c.b16 %v1892, %v1890
  %v1965 = vpack.c.b16 %v1893, %v1891
  %v1966 = vpack.c.b16 %v1896, %v1894
  %v1967 = vpack.c.b16 %v1897, %v1895
  %v1968 = vpack.c.b16 %v1900, %v1898
  %v1969 = vpack.c.b16 %v1901, %v1899
  %v1970 = vpack.c.b16 %v1904, %v1902
  %v1971 = vpack.c.b16 %v1905, %v1903
  %v1972 = vpack.c.b16 %v1908, %v1906
  %v1973 = vpack.c.b16 %v1909, %v1907
  %v1974 = vpack.c.b16 %v1912, %v1910
  %v1975 = vpack.c.b16 %v1913, %v1911
  %v1976 = vpack.c.b16 %v1916, %v1914
  %v1977 = vpack.c.b16 %v1917, %v1915
  %v1978 = vpack.c.b16 %v1920, %v1918
  %v1979 = vpack.c.b16 %v1921, %v1919
  %v1980 = vpack.c.b16 %v1924, %v1922
  %v1981 = vpack.c.b16 %v1925, %v1923
  %v1982 = vpack.c.b16 %v1928, %v1926
  %v1983 = vpack.c.b16 %v1929, %v1927
  %v1984 = vpack.c.b16 %v1932, %v1930
  %v1985 = vpack.c.b16 %v1933, %v1931
  %v1986 = vpack.c.b16 %v1936, %v1934
  %v1987 = vpack.c.b16 %v1937, %v1935
  %v1988 = vpack.c.b16 %v1940, %v1938
  %v1989 = vpack.c.b16 %v1941, %v1939
  %2038 = vmatpush.bf16.msra.mxu0 %v1956
  %2039 = vmatpush.bf16.msra.mxu0 %v1954
  %2040 = vmatpush.bf16.msra.mxu0 %v1952
  %2041 = vmatpush.bf16.msra.mxu0 %v1950
  %2042 = vmatpush.bf16.msra.mxu0 %v1948
  %2043 = vmatpush.bf16.msra.mxu0 %v1946
  %2044 = vmatpush.bf16.msra.mxu0 %v1944
  %2045 = vmatpush.bf16.msra.mxu0 %v1942
  %2046 = vmatmul.bf16.gmra.mxu0 %v1741
  %v2047 = vpop.f32.mrf.mxu0
  %v2048 = vadd.f32 %v1794, %v2047
  %v2049 = vpop.f32.mrf.mxu0
  %2050 = vdwg.mxu0
  %2051 = vmatpush.bf16.msra.mxu0 %v1972
  %2052 = vmatpush.bf16.msra.mxu0 %v1970
  %2053 = vmatpush.bf16.msra.mxu0 %v1968
  %2054 = vmatpush.bf16.msra.mxu0 %v1966
  %2055 = vmatpush.bf16.msra.mxu0 %v1964
  %2056 = vmatpush.bf16.msra.mxu0 %v1962
  %2057 = vmatpush.bf16.msra.mxu0 %v1960
  %2058 = vmatpush.bf16.msra.mxu0 %v1958
  %2059 = vmatmul.bf16.gmra.mxu0 %v1742
  %v2060 = vpop.f32.mrf.mxu0
  %v2061 = vadd.f32 %v2048, %v2060
  %v2062 = vpop.f32.mrf.mxu0
  %2063 = vdwg.mxu0
  %2064 = vmatpush.bf16.msra.mxu0 %v1988
  %2065 = vmatpush.bf16.msra.mxu0 %v1986
  %2066 = vmatpush.bf16.msra.mxu0 %v1984
  %2067 = vmatpush.bf16.msra.mxu0 %v1982
  %2068 = vmatpush.bf16.msra.mxu0 %v1980
  %2069 = vmatpush.bf16.msra.mxu0 %v1978
  %2070 = vmatpush.bf16.msra.mxu0 %v1976
  %2071 = vmatpush.bf16.msra.mxu0 %v1974
  %2072 = vmatmul.bf16.gmra.mxu0 %v1743
  %v2073 = vpop.f32.mrf.mxu0
  %v2074 = vadd.f32 %v2061, %v2073
  %v2075 = vpop.f32.mrf.mxu0
  %2076 = vdwg.mxu0
  %2077 = vmatpush.bf16.msra.mxu0 %v1957
  %2078 = vmatpush.bf16.msra.mxu0 %v1955
  %2079 = vmatpush.bf16.msra.mxu0 %v1953
  %2080 = vmatpush.bf16.msra.mxu0 %v1951
  %2081 = vmatpush.bf16.msra.mxu0 %v1949
  %2082 = vmatpush.bf16.msra.mxu0 %v1947
  %2083 = vmatpush.bf16.msra.mxu0 %v1945
  %2084 = vmatpush.bf16.msra.mxu0 %v1943
  %2085 = vmatmul.bf16.gmra.mxu0 %v1741
  %v2086 = vpop.f32.mrf.mxu0
  %v2087 = vadd.f32 %v1795, %v2086
  %v2088 = vpop.f32.mrf.mxu0
  %2089 = vdwg.mxu0
  %2090 = vmatpush.bf16.msra.mxu0 %v1973
  %2091 = vmatpush.bf16.msra.mxu0 %v1971
  %2092 = vmatpush.bf16.msra.mxu0 %v1969
  %2093 = vmatpush.bf16.msra.mxu0 %v1967
  %2094 = vmatpush.bf16.msra.mxu0 %v1965
  %2095 = vmatpush.bf16.msra.mxu0 %v1963
  %2096 = vmatpush.bf16.msra.mxu0 %v1961
  %2097 = vmatpush.bf16.msra.mxu0 %v1959
  %2098 = vmatmul.bf16.gmra.mxu0 %v1742
  %v2099 = vpop.f32.mrf.mxu0
  %v2100 = vadd.f32 %v2087, %v2099
  %v2101 = vpop.f32.mrf.mxu0
  %2102 = vdwg.mxu0
  %2103 = vmatpush.bf16.msra.mxu0 %v1989
  %2104 = vmatpush.bf16.msra.mxu0 %v1987
  %2105 = vmatpush.bf16.msra.mxu0 %v1985
  %2106 = vmatpush.bf16.msra.mxu0 %v1983
  %2107 = vmatpush.bf16.msra.mxu0 %v1981
  %2108 = vmatpush.bf16.msra.mxu0 %v1979
  %2109 = vmatpush.bf16.msra.mxu0 %v1977
  %2110 = vmatpush.bf16.msra.mxu0 %v1975
  %2111 = vmatmul.bf16.gmra.mxu0 %v1743
  %v2112 = vpop.f32.mrf.mxu0
  %v2113 = vadd.f32 %v2100, %v2112
  %v2114 = vpop.f32.mrf.mxu0
  %2115 = vdwg.mxu0
  %v2116 = vmax.f32 %v2074, 0.0
  %v2117 = vmax.f32 %v2113, 0.0
  %v2118 = vpack.c.bf16 %v2116, %v2116
  %v2119 = vpack.c.bf16 %v2117, %v2117
  %v2120 = vld [vmem:[%s5] sm:$0xf]
  %v2121 = vld [vmem:[%s5 + $0x4] sm:$0xf]
  %v2122 = vld [vmem:[%s5 + $0x8] sm:$0xf]
  %v2123 = vld [vmem:[%s5 + $0xc] sm:$0xf]
  %v2124 = vld [vmem:[%s5 + $0x10] sm:$0xf]
  %v2125 = vld [vmem:[%s5 + $0x14] sm:$0xf]
  %v2126 = vld [vmem:[%s5 + $0x18] sm:$0xf]
  %v2127 = vld [vmem:[%s5 + $0x1c] sm:$0xf]
  %v2128 = vld [vmem:[%s5 + $0x20] sm:$0xf]
  %v2129 = vld [vmem:[%s5 + $0x24] sm:$0xf]
  %v2130 = vld [vmem:[%s5 + $0x28] sm:$0xf]
  %v2131 = vld [vmem:[%s5 + $0x2c] sm:$0xf]
  %v2132 = vld [vmem:[%s5 + $0x30] sm:$0xf]
  %v2133 = vld [vmem:[%s5 + $0x34] sm:$0xf]
  %v2134 = vld [vmem:[%s5 + $0x38] sm:$0xf]
  %v2135 = vld [vmem:[%s5 + $0x3c] sm:$0xf]
  %v2136 = vld [vmem:[%s5 + $0x40] sm:$0xf]
  %v2137 = vld [vmem:[%s5 + $0x44] sm:$0xf]
  %v2138 = vld [vmem:[%s5 + $0x48] sm:$0xf]
  %v2139 = vld [vmem:[%s5 + $0x4c] sm:$0xf]
  %v2140 = vld [vmem:[%s5 + $0x50] sm:$0xf]
  %v2141 = vld [vmem:[%s5 + $0x54] sm:$0xf]
  %v2142 = vld [vmem:[%s5 + $0x58] sm:$0xf]
  %v2143 = vld [vmem:[%s5 + $0x5c] sm:$0xf]
  %v2144 = vld [vmem:[%s5 + $0x60] sm:$0xf]
  %v2145 = vld [vmem:[%s5 + $0x64] sm:$0xf]
  %v2146 = vld [vmem:[%s5 + $0x68] sm:$0xf]
  %v2147 = vld [vmem:[%s5 + $0x6c] sm:$0xf]
  %v2148 = vld [vmem:[%s5 + $0x70] sm:$0xf]
  %v2149 = vld [vmem:[%s5 + $0x74] sm:$0xf]
  %v2150 = vld [vmem:[%s5 + $0x78] sm:$0xf]
  %v2151 = vld [vmem:[%s5 + $0x7c] sm:$0xf]
  %v2152 = vld [vmem:[%s6] sm:$0x1]
  %v2154 = vperm.slane %v2152, 0
  %v2188 = vunpack.c.l.b16 %v2120
  %v2189 = vunpack.c.l.b16 %v2121
  %v2190 = vunpack.c.l.b16 %v2122
  %v2191 = vunpack.c.l.b16 %v2123
  %v2192 = vunpack.c.l.b16 %v2124
  %v2193 = vunpack.c.l.b16 %v2125
  %v2194 = vunpack.c.l.b16 %v2126
  %v2195 = vunpack.c.l.b16 %v2127
  %v2196 = vunpack.c.l.b16 %v2128
  %v2197 = vunpack.c.l.b16 %v2129
  %v2198 = vunpack.c.l.b16 %v2130
  %v2199 = vunpack.c.l.b16 %v2131
  %v2200 = vunpack.c.l.b16 %v2132
  %v2201 = vunpack.c.l.b16 %v2133
  %v2202 = vunpack.c.l.b16 %v2134
  %v2203 = vunpack.c.l.b16 %v2135
  %v2204 = vunpack.c.l.b16 %v2136
  %v2205 = vunpack.c.l.b16 %v2137
  %v2206 = vunpack.c.l.b16 %v2138
  %v2207 = vunpack.c.l.b16 %v2139
  %v2208 = vunpack.c.l.b16 %v2140
  %v2209 = vunpack.c.l.b16 %v2141
  %v2210 = vunpack.c.l.b16 %v2142
  %v2211 = vunpack.c.l.b16 %v2143
  %v2212 = vunpack.c.l.b16 %v2144
  %v2213 = vunpack.c.l.b16 %v2145
  %v2214 = vunpack.c.l.b16 %v2146
  %v2215 = vunpack.c.l.b16 %v2147
  %v2216 = vunpack.c.l.b16 %v2148
  %v2217 = vunpack.c.l.b16 %v2149
  %v2218 = vunpack.c.l.b16 %v2150
  %v2219 = vunpack.c.l.b16 %v2151
  %v2220 = vpack.c.b16 %v2189, %v2188
  %v2221 = vpack.c.b16 %v2191, %v2190
  %v2222 = vpack.c.b16 %v2193, %v2192
  %v2223 = vpack.c.b16 %v2195, %v2194
  %v2224 = vpack.c.b16 %v2197, %v2196
  %v2225 = vpack.c.b16 %v2199, %v2198
  %v2226 = vpack.c.b16 %v2201, %v2200
  %v2227 = vpack.c.b16 %v2203, %v2202
  %v2228 = vpack.c.b16 %v2205, %v2204
  %v2229 = vpack.c.b16 %v2207, %v2206
  %v2230 = vpack.c.b16 %v2209, %v2208
  %v2231 = vpack.c.b16 %v2211, %v2210
  %v2232 = vpack.c.b16 %v2213, %v2212
  %v2233 = vpack.c.b16 %v2215, %v2214
  %v2234 = vpack.c.b16 %v2217, %v2216
  %v2235 = vpack.c.b16 %v2219, %v2218
  %2252 = vmatpush.bf16.msra.mxu0 %v2227
  %2253 = vmatpush.bf16.msra.mxu0 %v2226
  %2254 = vmatpush.bf16.msra.mxu0 %v2225
  %2255 = vmatpush.bf16.msra.mxu0 %v2224
  %2256 = vmatpush.bf16.msra.mxu0 %v2223
  %2257 = vmatpush.bf16.msra.mxu0 %v2222
  %2258 = vmatpush.bf16.msra.mxu0 %v2221
  %2259 = vmatpush.bf16.msra.mxu0 %v2220
  %2260 = vmatmul.bf16.gmra.mxu0 %v2118
  %v2261 = vpop.f32.mrf.mxu0
  %v2262 = vadd.f32 %v2154, %v2261
  %v2263 = vpop.f32.mrf.mxu0
  %2264 = vdwg.mxu0
  %2265 = vmatpush.bf16.msra.mxu0 %v2235
  %2266 = vmatpush.bf16.msra.mxu0 %v2234
  %2267 = vmatpush.bf16.msra.mxu0 %v2233
  %2268 = vmatpush.bf16.msra.mxu0 %v2232
  %2269 = vmatpush.bf16.msra.mxu0 %v2231
  %2270 = vmatpush.bf16.msra.mxu0 %v2230
  %2271 = vmatpush.bf16.msra.mxu0 %v2229
  %2272 = vmatpush.bf16.msra.mxu0 %v2228
  %2273 = vmatmul.bf16.gmra.mxu0 %v2119
  %v2274 = vpop.f32.mrf.mxu0
  %v2275 = vadd.f32 %v2262, %v2274
  %v2276 = vpop.f32.mrf.mxu0
  %2277 = vdwg.mxu0
  %v2278 = vmax.f32 %v2275, 0.0
  %v2279 = vpack.c.bf16 %v2278, %v2278
  %v2280 = vld [vmem:[%s7] sm:$0xf]
  %v2281 = vld [vmem:[%s7 + $0x4] sm:$0xf]
  %v2282 = vld [vmem:[%s7 + $0x8] sm:$0xf]
  %v2283 = vld [vmem:[%s7 + $0xc] sm:$0xf]
  %v2284 = vld [vmem:[%s7 + $0x10] sm:$0xf]
  %v2285 = vld [vmem:[%s7 + $0x14] sm:$0xf]
  %v2286 = vld [vmem:[%s7 + $0x18] sm:$0xf]
  %v2287 = vld [vmem:[%s7 + $0x1c] sm:$0xf]
  %v2288 = vld [vmem:[%s7 + $0x20] sm:$0xf]
  %v2289 = vld [vmem:[%s7 + $0x24] sm:$0xf]
  %v2290 = vld [vmem:[%s7 + $0x28] sm:$0xf]
  %v2291 = vld [vmem:[%s7 + $0x2c] sm:$0xf]
  %v2292 = vld [vmem:[%s7 + $0x30] sm:$0xf]
  %v2293 = vld [vmem:[%s7 + $0x34] sm:$0xf]
  %v2294 = vld [vmem:[%s7 + $0x38] sm:$0xf]
  %v2295 = vld [vmem:[%s7 + $0x3c] sm:$0xf]
  %v2296 = vld [vmem:[%s8] sm:$0x1]
  %v2298 = vperm.slane %v2296, 0
  %v2316 = vunpack.c.l.b16 %v2280
  %v2317 = vunpack.c.l.b16 %v2281
  %v2318 = vunpack.c.l.b16 %v2282
  %v2319 = vunpack.c.l.b16 %v2283
  %v2320 = vunpack.c.l.b16 %v2284
  %v2321 = vunpack.c.l.b16 %v2285
  %v2322 = vunpack.c.l.b16 %v2286
  %v2323 = vunpack.c.l.b16 %v2287
  %v2324 = vunpack.c.l.b16 %v2288
  %v2325 = vunpack.c.l.b16 %v2289
  %v2326 = vunpack.c.l.b16 %v2290
  %v2327 = vunpack.c.l.b16 %v2291
  %v2328 = vunpack.c.l.b16 %v2292
  %v2329 = vunpack.c.l.b16 %v2293
  %v2330 = vunpack.c.l.b16 %v2294
  %v2331 = vunpack.c.l.b16 %v2295
  %v2332 = vpack.c.b16 %v2317, %v2316
  %v2333 = vpack.c.b16 %v2319, %v2318
  %v2334 = vpack.c.b16 %v2321, %v2320
  %v2335 = vpack.c.b16 %v2323, %v2322
  %v2336 = vpack.c.b16 %v2325, %v2324
  %v2337 = vpack.c.b16 %v2327, %v2326
  %v2338 = vpack.c.b16 %v2329, %v2328
  %v2339 = vpack.c.b16 %v2331, %v2330
  %2348 = vmatpush.bf16.msra.mxu0 %v2339
  %2349 = vmatpush.bf16.msra.mxu0 %v2338
  %2350 = vmatpush.bf16.msra.mxu0 %v2337
  %2351 = vmatpush.bf16.msra.mxu0 %v2336
  %2352 = vmatpush.bf16.msra.mxu0 %v2335
  %2353 = vmatpush.bf16.msra.mxu0 %v2334
  %2354 = vmatpush.bf16.msra.mxu0 %v2333
  %2355 = vmatpush.bf16.msra.mxu0 %v2332
  %2356 = vmatmul.bf16.gmra.mxu0 %v2279
  %v2357 = vpop.f32.mrf.mxu0
  %v2358 = vadd.f32 %v2298, %v2357
  %v2359 = vpop.f32.mrf.mxu0
  %2360 = vdwg.mxu0
  %v2361 = vmax.f32 %v2358, 0.0
  %v2362 = vpack.c.bf16 %v2361, %v2361
  %v2363 = vld [vmem:[%s9] sm:$0xf]
  %v2364 = vld [vmem:[%s9 + $0x4] sm:$0xf]
  %v2365 = vld [vmem:[%s9 + $0x8] sm:$0xf]
  %v2366 = vld [vmem:[%s9 + $0xc] sm:$0xf]
  %v2367 = vld [vmem:[%s9 + $0x10] sm:$0xf]
  %v2368 = vld [vmem:[%s9 + $0x14] sm:$0xf]
  %v2369 = vld [vmem:[%s9 + $0x18] sm:$0xf]
  %v2370 = vld [vmem:[%s9 + $0x1c] sm:$0xf]
  %v2371 = vld [vmem:[%s10] sm:$0x1]
  %v2373 = vperm.slane %v2371, 0
  %v2383 = vunpack.c.l.b16 %v2363
  %v2384 = vunpack.c.l.b16 %v2364
  %v2385 = vunpack.c.l.b16 %v2365
  %v2386 = vunpack.c.l.b16 %v2366
  %v2387 = vunpack.c.l.b16 %v2367
  %v2388 = vunpack.c.l.b16 %v2368
  %v2389 = vunpack.c.l.b16 %v2369
  %v2390 = vunpack.c.l.b16 %v2370
  %v2391 = vpack.c.b16 %v2384, %v2383
  %v2392 = vpack.c.b16 %v2386, %v2385
  %v2393 = vpack.c.b16 %v2388, %v2387
  %v2394 = vpack.c.b16 %v2390, %v2389
  %vm2399 = vcmask 523264
  %v2401 = vsel %vm2399, %v2362, 0
  %2403 = vmatpush.bf16.msra.mxu0 0
  %2404 = vmatpush.bf16.msra.mxu0 0
  %2405 = vmatpush.bf16.msra.mxu0 0
  %2406 = vmatpush.bf16.msra.mxu0 0
  %2407 = vmatpush.bf16.msra.mxu0 %v2394
  %2408 = vmatpush.bf16.msra.mxu0 %v2393
  %2409 = vmatpush.bf16.msra.mxu0 %v2392
  %2410 = vmatpush.bf16.msra.mxu0 %v2391
  %2411 = vmatmul.bf16.gmra.mxu0 %v2401
  %v2412 = vpop.f32.mrf.mxu0
  %v2413 = vadd.f32 %v2373, %v2412
  %v2414 = vpop.f32.mrf.mxu0
  %2415 = vdwg.mxu0
  %2416 = vst [vmem:[%s11] sm:$0xff] %v2413
  // Predicated region
  $region46: #{dqn_forward_pallas.1} parent=0 // pred_check
    _
  $region47: #{dqn_forward_pallas.1} parent=0 // pred_check_branch
    %2418 = sbr.rel (0) target = $region49
  $region48: #{dqn_forward_pallas.1} parent=0 // pred_region
    _
  $region49: #{dqn_forward_pallas.1} parent=0 // pred_fallthru
    _
  // Predicated region
  $region50: #{dqn_forward_pallas.1} parent=0 // pred_check
    _
  $region51: #{dqn_forward_pallas.1} parent=0 // pred_check_branch
    %2420 = sbr.rel (0) target = $region53
  $region52: #{dqn_forward_pallas.1} parent=0 // pred_region
    _
  $region53: #{dqn_forward_pallas.1} parent=0 // pred_fallthru
    _

</llo_original>
